<compile_context>
chip_gen: v7x
topology: tpu7x:2x2x1
jax: 0.10.0
libtpu: 0.0.40
codegen_flags: <defaults>
</compile_context>

<pallas_src>
import functools

import numpy as np
import jax
import jax.numpy as jnp
from jax import lax
from jax.experimental import pallas as pl
from jax.experimental.pallas import tpu as pltpu


# -----------------------------------------------------------------------------
# Fused kernel.  One group of `nb` packed images per grid step, channels-major
# (C, L) layout with L = nb*H*W (lane-dense, multiple of 128).
#   x_ref   : (1, Cin, L)
#   s1,b1   : (Cin, 1)        folded BN1 scale / shift
#   w1_ref  : (Cmid, Cin)     conv1 weight with BN2 scale folded in (f32)
#   b2_ref  : (Cmid, 1)       folded BN2 shift
#   w2_ref  : (Cout, 9*Cmid)  conv2 weight, tap-major/channel-minor, bf16
#   m_ref   : (9, L)          per-tap H/W-boundary (and image-boundary) masks
#   o_ref   : (1, Cout, L)
# taps[k] = (ky-1)*W + (kx-1) is the flat source offset of 3x3 tap k.
# -----------------------------------------------------------------------------
def _dense_layer_kernel(x_ref, s1_ref, b1_ref, w1_ref, b2_ref, w2_ref, m_ref,
                        o_ref, *, taps, cin_fma):
    Cin, L = x_ref.shape[1], x_ref.shape[2]

    # --- BN1 (folded) + ReLU : f32 VPU ----------------------------------------
    x = x_ref[0].astype(jnp.float32)                              # (Cin, L)
    xn = jnp.maximum(x * s1_ref[...] + b1_ref[...], 0.0)

    # --- conv1 (1x1), BN2 scale pre-folded into the weight ---------------------
    if cin_fma:
        # K = Cin is tiny: Cin broadcast FMAs on the VPU (skip the MXU).
        w1 = w1_ref[...]                                          # (Cmid, Cin)
        y = w1[:, 0:1] * xn[0:1, :]
        for c in range(1, Cin):
            y = y + w1[:, c:c + 1] * xn[c:c + 1, :]
    else:
        y = jnp.dot(w1_ref[...].astype(jnp.bfloat16), xn.astype(jnp.bfloat16),
                    preferred_element_type=jnp.float32)
    y = jnp.maximum(y + b2_ref[...], 0.0)                         # BN2 shift + ReLU

    # --- conv2 (3x3, padding=1): rolled+masked tap slabs, one fused matmul -----
    # Output pixel p reads source p + d (d = taps[k]); the roll is circular over
    # the packed lane axis, and the precomputed mask zeroes every H-boundary,
    # W-boundary and cross-image wrap, so the circular wrap never leaks.
    slabs = []
    for k, d in enumerate(taps):
        sh = y if d == 0 else pltpu.roll(y, shift=(-d) % L, axis=1)
        if d != 0:
            sh = sh * m_ref[k:k + 1, :]                           # f32 VPU mask
        slabs.append(sh.astype(jnp.bfloat16))
    z = jnp.concatenate(slabs, axis=0)                            # (9*Cmid, L) bf16

    out = jnp.dot(w2_ref[...], z, preferred_element_type=jnp.float32)  # (Cout, L)
    o_ref[0] = out.astype(o_ref.dtype)


def _as_list(inputs):
    return list(inputs) if isinstance(inputs, (list, tuple)) else [inputs]


# -----------------------------------------------------------------------------
# _DenseLayer forward (drop_rate = 0.0, inference-mode BatchNorm), NCHW in/out.
# params use PyTorch-native shapes: w1 (Cmid,Cin,1,1), w2 (Cout,Cmid,3,3).
# -----------------------------------------------------------------------------
def dense_layer_forward(inputs, params, eps=1e-5):
    x = jnp.concatenate(_as_list(inputs), axis=1)                 # torch.cat(inputs, 1)
    N, Cin, H, W = x.shape
    HW = H * W

    w1 = params["w1"].reshape(params["w1"].shape[0], Cin)         # (Cmid, Cin)
    w2 = params["w2"]                                             # (Cout, Cmid, 3, 3)
    Cmid, Cout = w1.shape[0], w2.shape[0]

    # Fold BatchNorm (running stats) into scale+shift; fold BN2 scale into w1.
    s1 = params["g1"] / jnp.sqrt(params["rv1"] + eps)
    b1 = params["b1"] - params["rm1"] * s1
    s2 = params["g2"] / jnp.sqrt(params["rv2"] + eps)
    b2 = params["b2"] - params["rm2"] * s2
    w1s = w1 * s2[:, None]                                        # (Cmid, Cin) f32
    # conv2 weight flattened tap-major/channel-minor, shipped in bf16.
    w2flat = jnp.transpose(w2, (0, 2, 3, 1)).reshape(Cout, 9 * Cmid).astype(jnp.bfloat16)

    # Pack nb images per grid step along the lane axis (collapses the grid to a
    # single step at toy sizes; keeps per-step working set within budget).
    per_image = 4 * HW * (Cin + Cout + Cmid + 2 * 9 * Cmid)       # rough bytes/image
    budget = 8 * 1024 * 1024
    nb = 1
    for d in range(1, N + 1):
        if N % d == 0 and d * per_image <= budget:
            nb = d
    G = N // nb
    L = nb * HW

    # Host-side per-tap validity masks over the packed lane axis (1.0 = valid).
    p = np.arange(L)
    hh = (p % HW) // W
    ww = p % W
    masks = np.empty((9, L), np.float32)
    for ky in range(3):
        for kx in range(3):
            hv = (hh + ky - 1 >= 0) & (hh + ky - 1 <= H - 1)
            wv = (ww + kx - 1 >= 0) & (ww + kx - 1 <= W - 1)
            masks[ky * 3 + kx] = (hv & wv).astype(np.float32)
    taps = tuple((ky - 1) * W + (kx - 1) for ky in range(3) for kx in range(3))

    # (N, Cin, H, W) -> (G, Cin, nb*HW): image index packed into the lane axis.
    xg = x.reshape(G, nb, Cin, HW).transpose(0, 2, 1, 3).reshape(G, Cin, L)

    kern = functools.partial(_dense_layer_kernel, taps=taps, cin_fma=(Cin <= 8))

    def _const_spec(shape):
        return pl.BlockSpec(shape, lambda g: (0,) * len(shape))

    flops = 2 * N * HW * (Cmid * Cin + 9 * Cmid * Cout)
    bytes_accessed = int(xg.size) * 4 + int(w1s.size) * 4 + int(w2flat.size) * 2 \
        + (2 * Cin + 2 * Cmid) * 4 + int(masks.size) * 4 + N * Cout * HW * 4
    vmem_limit = int(min(64 * 1024 * 1024,
                         max(4 * 1024 * 1024, 3 * per_image * nb + 2 * 1024 * 1024)))

    outg = pl.pallas_call(
        kern,
        out_shape=jax.ShapeDtypeStruct((G, Cout, L), jnp.float32),
        grid=(G,),
        in_specs=[
            pl.BlockSpec((1, Cin, L), lambda g: (g, 0, 0)),
            _const_spec((Cin, 1)), _const_spec((Cin, 1)),
            _const_spec((Cmid, Cin)), _const_spec((Cmid, 1)),
            _const_spec((Cout, 9 * Cmid)),
            _const_spec((9, L)),
        ],
        out_specs=pl.BlockSpec((1, Cout, L), lambda g: (g, 0, 0)),
        compiler_params=pltpu.CompilerParams(
            dimension_semantics=("parallel",),
            vmem_limit_bytes=vmem_limit,
        ),
        cost_estimate=pl.CostEstimate(flops=flops, transcendentals=0,
                                      bytes_accessed=bytes_accessed),
    )(xg, s1.reshape(Cin, 1), b1.reshape(Cin, 1), w1s, b2.reshape(Cmid, 1),
      w2flat, jnp.asarray(masks))

    # drop_rate == 0.0 -> dropout is the identity.
    # TODO(synk): dropout for drop_rate > 0 (training mode, pltpu.prng_*) not implemented.
    # TODO(synk): for production DenseNet sizes (large H*W or Cin ~1k), add a second
    # "parallel" grid axis over H row-bands (1-row halo recompute), with band height
    # sized for v7x's 64 MiB VMEM (<= ~12-16 MiB/step double-buffered), not v5e/v6e's 128 MiB.
    return outg.reshape(G, Cout, nb, HW).transpose(0, 2, 1, 3).reshape(N, Cout, H, W)


# -----------------------------------------------------------------------------
# Plain-JAX reference (NCHW) for verification.
# -----------------------------------------------------------------------------
def dense_layer_reference(inputs, params, eps=1e-5):
    x = jnp.concatenate(_as_list(inputs), axis=1)

    def bn(v, g, b, rm, rv):
        return ((v - rm[None, :, None, None])
                / jnp.sqrt(rv[None, :, None, None] + eps)
                * g[None, :, None, None] + b[None, :, None, None])

    xn = jnp.maximum(bn(x, params["g1"], params["b1"], params["rm1"], params["rv1"]), 0.0)
    y = lax.conv_general_dilated(xn, params["w1"], (1, 1), ((0, 0), (0, 0)),
                                 dimension_numbers=("NCHW", "OIHW", "NCHW"))
    yn = jnp.maximum(bn(y, params["g2"], params["b2"], params["rm2"], params["rv2"]), 0.0)
    out = lax.conv_general_dilated(yn, params["w2"], (1, 1), ((1, 1), (1, 1)),
                                   dimension_numbers=("NCHW", "OIHW", "NCHW"))
    return out


if __name__ == "__main__":
    # Module config: num_input_features=4, growth_rate=8, bn_size=4, drop_rate=0.0
    num_input_features, growth_rate, bn_size = 4, 8, 4
    Cin, Cmid, Cout = num_input_features, bn_size * growth_rate, growth_rate
    N, H, W = 2, 16, 16

    key = jax.random.PRNGKey(0)
    ks = jax.random.split(key, 11)

    params = {
        "g1": jax.random.normal(ks[0], (Cin,), jnp.float32) * 0.1 + 1.0,
        "b1": jax.random.normal(ks[1], (Cin,), jnp.float32) * 0.1,
        "rm1": jax.random.normal(ks[2], (Cin,), jnp.float32) * 0.1,
        "rv1": jax.random.uniform(ks[3], (Cin,), jnp.float32, 0.5, 1.5),
        "w1": jax.random.normal(ks[4], (Cmid, Cin, 1, 1), jnp.float32) * 0.2,
        "g2": jax.random.normal(ks[5], (Cmid,), jnp.float32) * 0.1 + 1.0,
        "b2": jax.random.normal(ks[6], (Cmid,), jnp.float32) * 0.1,
        "rm2": jax.random.normal(ks[7], (Cmid,), jnp.float32) * 0.1,
        "rv2": jax.random.uniform(ks[8], (Cmid,), jnp.float32, 0.5, 1.5),
        "w2": jax.random.normal(ks[9], (Cout, Cmid, 3, 3), jnp.float32) * 0.1,
    }

    # Input in PyTorch convention (N, C, H, W).
    x_nchw = jax.random.normal(ks[10], (N, Cin, H, W), jnp.float32)

    out = dense_layer_forward([x_nchw], params)
    out = jax.block_until_ready(out)

    ref = dense_layer_reference([x_nchw], params)
    assert out.shape == (N, Cout, H, W)
    # bf16 MXU operands for conv2 -> looser tolerance than a pure-f32 path.
    assert jnp.allclose(out, ref, atol=3e-2, rtol=3e-2), "mismatch vs reference"

    print("KERNEL_OK")
</pallas_src>

<mosaic_0001>
module attributes {stable_mosaic.version = 11 : i64} {
  func.func @_dense_layer_kernel(%arg0: i32, %arg1: memref<1x4x512xf32, #tpu.memory_space<vmem>>, %arg2: memref<4x1xf32, #tpu.memory_space<vmem>>, %arg3: memref<4x1xf32, #tpu.memory_space<vmem>>, %arg4: memref<32x4xf32, #tpu.memory_space<vmem>>, %arg5: memref<32x1xf32, #tpu.memory_space<vmem>>, %arg6: memref<8x288xbf16, #tpu.memory_space<vmem>>, %arg7: memref<9x512xf32, #tpu.memory_space<vmem>>, %arg8: memref<1x8x512xf32, #tpu.memory_space<vmem>>) attributes {dimension_semantics = [#tpu.dimension_semantics<parallel>], iteration_bounds = array<i64: 1>, scalar_prefetch = 0 : i64, scratch_operands = 0 : i64, tpu.core_type = #tpu.core_type<tc>, window_params = [{transform_indices = @transform_0, window_bounds = array<i64: 1, 4, 512>}, {pipeline_mode = #tpu.pipeline_mode<synchronous>, transform_indices = @transform_1, window_bounds = array<i64: 4, 1>}, {pipeline_mode = #tpu.pipeline_mode<synchronous>, transform_indices = @transform_2, window_bounds = array<i64: 4, 1>}, {pipeline_mode = #tpu.pipeline_mode<synchronous>, transform_indices = @transform_3, window_bounds = array<i64: 32, 4>}, {pipeline_mode = #tpu.pipeline_mode<synchronous>, transform_indices = @transform_4, window_bounds = array<i64: 32, 1>}, {pipeline_mode = #tpu.pipeline_mode<synchronous>, transform_indices = @transform_5, window_bounds = array<i64: 8, 288>}, {pipeline_mode = #tpu.pipeline_mode<synchronous>, transform_indices = @transform_6, window_bounds = array<i64: 9, 512>}, {transform_indices = @transform_7, window_bounds = array<i64: 1, 8, 512>}]} {
    %c0 = arith.constant 0 : index
    %c0_0 = arith.constant 0 : index
    %c0_1 = arith.constant 0 : index
    %0 = vector.load %arg1[%c0, %c0_0, %c0_1] : memref<1x4x512xf32, #tpu.memory_space<vmem>>, vector<1x4x512xf32>
    %1 = vector.shape_cast %0 : vector<1x4x512xf32> to vector<4x512xf32>
    %c0_2 = arith.constant 0 : index
    %c0_3 = arith.constant 0 : index
    %2 = vector.load %arg2[%c0_2, %c0_3] : memref<4x1xf32, #tpu.memory_space<vmem>>, vector<4x1xf32>
    %3 = vector.broadcast %2 : vector<4x1xf32> to vector<4x512xf32>
    %4 = arith.mulf %1, %3 : vector<4x512xf32>
    %c0_4 = arith.constant 0 : index
    %c0_5 = arith.constant 0 : index
    %5 = vector.load %arg3[%c0_4, %c0_5] : memref<4x1xf32, #tpu.memory_space<vmem>>, vector<4x1xf32>
    %6 = vector.broadcast %5 : vector<4x1xf32> to vector<4x512xf32>
    %7 = arith.addf %4, %6 : vector<4x512xf32>
    %cst = arith.constant 0.000000e+00 : f32
    %8 = vector.broadcast %cst : f32 to vector<4x512xf32>
    %9 = arith.maximumf %7, %8 : vector<4x512xf32>
    %c0_6 = arith.constant 0 : index
    %c0_7 = arith.constant 0 : index
    %10 = vector.load %arg4[%c0_6, %c0_7] : memref<32x4xf32, #tpu.memory_space<vmem>>, vector<32x4xf32>
    %11 = vector.extract_strided_slice %10 {offsets = [0, 0], sizes = [32, 1], strides = [1, 1]} : vector<32x4xf32> to vector<32x1xf32>
    %12 = vector.extract_strided_slice %9 {offsets = [0, 0], sizes = [1, 512], strides = [1, 1]} : vector<4x512xf32> to vector<1x512xf32>
    %13 = vector.broadcast %11 : vector<32x1xf32> to vector<32x512xf32>
    %14 = vector.broadcast %12 : vector<1x512xf32> to vector<32x512xf32>
    %15 = arith.mulf %13, %14 : vector<32x512xf32>
    %16 = vector.extract_strided_slice %10 {offsets = [0, 1], sizes = [32, 1], strides = [1, 1]} : vector<32x4xf32> to vector<32x1xf32>
    %17 = vector.extract_strided_slice %9 {offsets = [1, 0], sizes = [1, 512], strides = [1, 1]} : vector<4x512xf32> to vector<1x512xf32>
    %18 = vector.broadcast %16 : vector<32x1xf32> to vector<32x512xf32>
    %19 = vector.broadcast %17 : vector<1x512xf32> to vector<32x512xf32>
    %20 = arith.mulf %18, %19 : vector<32x512xf32>
    %21 = arith.addf %15, %20 : vector<32x512xf32>
    %22 = vector.extract_strided_slice %10 {offsets = [0, 2], sizes = [32, 1], strides = [1, 1]} : vector<32x4xf32> to vector<32x1xf32>
    %23 = vector.extract_strided_slice %9 {offsets = [2, 0], sizes = [1, 512], strides = [1, 1]} : vector<4x512xf32> to vector<1x512xf32>
    %24 = vector.broadcast %22 : vector<32x1xf32> to vector<32x512xf32>
    %25 = vector.broadcast %23 : vector<1x512xf32> to vector<32x512xf32>
    %26 = arith.mulf %24, %25 : vector<32x512xf32>
    %27 = arith.addf %21, %26 : vector<32x512xf32>
    %28 = vector.extract_strided_slice %10 {offsets = [0, 3], sizes = [32, 1], strides = [1, 1]} : vector<32x4xf32> to vector<32x1xf32>
    %29 = vector.extract_strided_slice %9 {offsets = [3, 0], sizes = [1, 512], strides = [1, 1]} : vector<4x512xf32> to vector<1x512xf32>
    %30 = vector.broadcast %28 : vector<32x1xf32> to vector<32x512xf32>
    %31 = vector.broadcast %29 : vector<1x512xf32> to vector<32x512xf32>
    %32 = arith.mulf %30, %31 : vector<32x512xf32>
    %33 = arith.addf %27, %32 : vector<32x512xf32>
    %c0_8 = arith.constant 0 : index
    %c0_9 = arith.constant 0 : index
    %34 = vector.load %arg5[%c0_8, %c0_9] : memref<32x1xf32, #tpu.memory_space<vmem>>, vector<32x1xf32>
    %35 = vector.broadcast %34 : vector<32x1xf32> to vector<32x512xf32>
    %36 = arith.addf %33, %35 : vector<32x512xf32>
    %cst_10 = arith.constant 0.000000e+00 : f32
    %37 = vector.broadcast %cst_10 : f32 to vector<32x512xf32>
    %38 = arith.maximumf %36, %37 : vector<32x512xf32>
    %c17_i32 = arith.constant 17 : i32
    %39 = tpu.dynamic_rotate %38 by %c17_i32 dim 1 : vector<32x512xf32>, i32 -> vector<32x512xf32>
    %c0_11 = arith.constant 0 : index
    %c0_12 = arith.constant 0 : index
    %40 = vector.load %arg7[%c0_11, %c0_12] : memref<9x512xf32, #tpu.memory_space<vmem>>, vector<1x512xf32>
    %41 = vector.broadcast %40 : vector<1x512xf32> to vector<32x512xf32>
    %42 = arith.mulf %39, %41 : vector<32x512xf32>
    %43 = arith.truncf %42 : vector<32x512xf32> to vector<32x512xbf16>
    %c16_i32 = arith.constant 16 : i32
    %44 = tpu.dynamic_rotate %38 by %c16_i32 dim 1 : vector<32x512xf32>, i32 -> vector<32x512xf32>
    %c1 = arith.constant 1 : index
    %c0_13 = arith.constant 0 : index
    %45 = vector.load %arg7[%c1, %c0_13] : memref<9x512xf32, #tpu.memory_space<vmem>>, vector<1x512xf32>
    %46 = vector.broadcast %45 : vector<1x512xf32> to vector<32x512xf32>
    %47 = arith.mulf %44, %46 : vector<32x512xf32>
    %48 = arith.truncf %47 : vector<32x512xf32> to vector<32x512xbf16>
    %c15_i32 = arith.constant 15 : i32
    %49 = tpu.dynamic_rotate %38 by %c15_i32 dim 1 : vector<32x512xf32>, i32 -> vector<32x512xf32>
    %c2 = arith.constant 2 : index
    %c0_14 = arith.constant 0 : index
    %50 = vector.load %arg7[%c2, %c0_14] : memref<9x512xf32, #tpu.memory_space<vmem>>, vector<1x512xf32>
    %51 = vector.broadcast %50 : vector<1x512xf32> to vector<32x512xf32>
    %52 = arith.mulf %49, %51 : vector<32x512xf32>
    %53 = arith.truncf %52 : vector<32x512xf32> to vector<32x512xbf16>
    %c1_i32 = arith.constant 1 : i32
    %54 = tpu.dynamic_rotate %38 by %c1_i32 dim 1 : vector<32x512xf32>, i32 -> vector<32x512xf32>
    %c3 = arith.constant 3 : index
    %c0_15 = arith.constant 0 : index
    %55 = vector.load %arg7[%c3, %c0_15] : memref<9x512xf32, #tpu.memory_space<vmem>>, vector<1x512xf32>
    %56 = vector.broadcast %55 : vector<1x512xf32> to vector<32x512xf32>
    %57 = arith.mulf %54, %56 : vector<32x512xf32>
    %58 = arith.truncf %57 : vector<32x512xf32> to vector<32x512xbf16>
    %59 = arith.truncf %38 : vector<32x512xf32> to vector<32x512xbf16>
    %c511_i32 = arith.constant 511 : i32
    %60 = tpu.dynamic_rotate %38 by %c511_i32 dim 1 : vector<32x512xf32>, i32 -> vector<32x512xf32>
    %c5 = arith.constant 5 : index
    %c0_16 = arith.constant 0 : index
    %61 = vector.load %arg7[%c5, %c0_16] : memref<9x512xf32, #tpu.memory_space<vmem>>, vector<1x512xf32>
    %62 = vector.broadcast %61 : vector<1x512xf32> to vector<32x512xf32>
    %63 = arith.mulf %60, %62 : vector<32x512xf32>
    %64 = arith.truncf %63 : vector<32x512xf32> to vector<32x512xbf16>
    %c497_i32 = arith.constant 497 : i32
    %65 = tpu.dynamic_rotate %38 by %c497_i32 dim 1 : vector<32x512xf32>, i32 -> vector<32x512xf32>
    %c6 = arith.constant 6 : index
    %c0_17 = arith.constant 0 : index
    %66 = vector.load %arg7[%c6, %c0_17] : memref<9x512xf32, #tpu.memory_space<vmem>>, vector<1x512xf32>
    %67 = vector.broadcast %66 : vector<1x512xf32> to vector<32x512xf32>
    %68 = arith.mulf %65, %67 : vector<32x512xf32>
    %69 = arith.truncf %68 : vector<32x512xf32> to vector<32x512xbf16>
    %c496_i32 = arith.constant 496 : i32
    %70 = tpu.dynamic_rotate %38 by %c496_i32 dim 1 : vector<32x512xf32>, i32 -> vector<32x512xf32>
    %c7 = arith.constant 7 : index
    %c0_18 = arith.constant 0 : index
    %71 = vector.load %arg7[%c7, %c0_18] : memref<9x512xf32, #tpu.memory_space<vmem>>, vector<1x512xf32>
    %72 = vector.broadcast %71 : vector<1x512xf32> to vector<32x512xf32>
    %73 = arith.mulf %70, %72 : vector<32x512xf32>
    %74 = arith.truncf %73 : vector<32x512xf32> to vector<32x512xbf16>
    %c495_i32 = arith.constant 495 : i32
    %75 = tpu.dynamic_rotate %38 by %c495_i32 dim 1 : vector<32x512xf32>, i32 -> vector<32x512xf32>
    %c8 = arith.constant 8 : index
    %c0_19 = arith.constant 0 : index
    %76 = vector.load %arg7[%c8, %c0_19] : memref<9x512xf32, #tpu.memory_space<vmem>>, vector<1x512xf32>
    %77 = vector.broadcast %76 : vector<1x512xf32> to vector<32x512xf32>
    %78 = arith.mulf %75, %77 : vector<32x512xf32>
    %79 = arith.truncf %78 : vector<32x512xf32> to vector<32x512xbf16>
    %80 = tpu.concatenate %43, %48, %53, %58, %59, %64, %69, %74, %79 in 0 : vector<32x512xbf16>, vector<32x512xbf16>, vector<32x512xbf16>, vector<32x512xbf16>, vector<32x512xbf16>, vector<32x512xbf16>, vector<32x512xbf16>, vector<32x512xbf16>, vector<32x512xbf16> -> vector<288x512xbf16>
    %c0_20 = arith.constant 0 : index
    %c0_21 = arith.constant 0 : index
    %81 = vector.load %arg6[%c0_20, %c0_21] : memref<8x288xbf16, #tpu.memory_space<vmem>>, vector<8x288xbf16>
    %cst_22 = arith.constant dense<0.000000e+00> : vector<8x512xf32>
    %82 = tpu.matmul %81, %80, %cst_22 {dimension_numbers = #tpu.dot_dimension_numbers<[1], [0], [0], [1], [0, 0, 1, 1], [], []>} : vector<8x288xbf16>, vector<288x512xbf16>, vector<8x512xf32> -> vector<8x512xf32>
    %c0_23 = arith.constant 0 : index
    %c0_24 = arith.constant 0 : index
    %c0_25 = arith.constant 0 : index
    %83 = vector.load %arg8[%c0_23, %c0_24, %c0_25] : memref<1x8x512xf32, #tpu.memory_space<vmem>>, vector<1x8x512xf32>
    %84 = vector.shape_cast %83 : vector<1x8x512xf32> to vector<8x512xf32>
    %85 = vector.shape_cast %82 : vector<8x512xf32> to vector<1x8x512xf32>
    tpu.vector_store %arg8[%c0_23, %c0_24, %c0_25], %85 {strides = array<i32>} : memref<1x8x512xf32, #tpu.memory_space<vmem>>, vector<1x8x512xf32>,
    return
  }
  func.func @transform_0(%arg0: i32) -> (i32, i32, i32) {
    %c0_i32 = arith.constant 0 : i32
    %c0_i32_0 = arith.constant 0 : i32
    %c0_i32_1 = arith.constant 0 : i32
    return %arg0, %c0_i32, %c0_i32_0 : i32, i32, i32
  }
  func.func @transform_1(%arg0: i32) -> (i32, i32) {
    %c0_i32 = arith.constant 0 : i32
    %c0_i32_0 = arith.constant 0 : i32
    %c0_i32_1 = arith.constant 0 : i32
    return %c0_i32, %c0_i32_0 : i32, i32
  }
  func.func @transform_2(%arg0: i32) -> (i32, i32) {
    %c0_i32 = arith.constant 0 : i32
    %c0_i32_0 = arith.constant 0 : i32
    %c0_i32_1 = arith.constant 0 : i32
    return %c0_i32, %c0_i32_0 : i32, i32
  }
  func.func @transform_3(%arg0: i32) -> (i32, i32) {
    %c0_i32 = arith.constant 0 : i32
    %c0_i32_0 = arith.constant 0 : i32
    %c0_i32_1 = arith.constant 0 : i32
    return %c0_i32, %c0_i32_0 : i32, i32
  }
  func.func @transform_4(%arg0: i32) -> (i32, i32) {
    %c0_i32 = arith.constant 0 : i32
    %c0_i32_0 = arith.constant 0 : i32
    %c0_i32_1 = arith.constant 0 : i32
    return %c0_i32, %c0_i32_0 : i32, i32
  }
  func.func @transform_5(%arg0: i32) -> (i32, i32) {
    %c0_i32 = arith.constant 0 : i32
    %c0_i32_0 = arith.constant 0 : i32
    %c0_i32_1 = arith.constant 0 : i32
    return %c0_i32, %c0_i32_0 : i32, i32
  }
  func.func @transform_6(%arg0: i32) -> (i32, i32) {
    %c0_i32 = arith.constant 0 : i32
    %c0_i32_0 = arith.constant 0 : i32
    %c0_i32_1 = arith.constant 0 : i32
    return %c0_i32, %c0_i32_0 : i32, i32
  }
  func.func @transform_7(%arg0: i32) -> (i32, i32, i32) {
    %c0_i32 = arith.constant 0 : i32
    %c0_i32_0 = arith.constant 0 : i32
    %c0_i32_1 = arith.constant 0 : i32
    return %arg0, %c0_i32, %c0_i32_0 : i32, i32, i32
  }
}

</mosaic_0001>

<llo_original>
// kernel: tpu_custom_call.1
$region0: #{tpu_custom_call.1}
  #allocation0 [shape = 'u32[]', space=smem, size = 0x4, offset = 0x4, fixed_abs, tag = 'smem constant byte address 0x4 - core index']
  #allocation1 [shape = 'u32[144,128]{1,0:T(1,128)}', space=vmem, size = 0x12000, scoped, tag = 'internal scratch']
  %s0 = inlined_call_operand.vmem [shape: f32[1,4,512], index: 0, kind: input, shape index: {}]
  %s1 = inlined_call_operand.vmem [shape: f32[4,1], index: 1, kind: input, shape index: {}]
  %s2 = inlined_call_operand.vmem [shape: f32[4,1], index: 2, kind: input, shape index: {}]
  %s3 = inlined_call_operand.vmem [shape: f32[32,4], index: 3, kind: input, shape index: {}]
  %s4 = inlined_call_operand.vmem [shape: f32[32,1], index: 4, kind: input, shape index: {}]
  %s5 = inlined_call_operand.vmem [shape: bf16[8,288], index: 5, kind: input, shape index: {}]
  %s6 = inlined_call_operand.vmem [shape: f32[9,512], index: 6, kind: input, shape index: {}]
  %s7 = inlined_call_operand.hbm [shape: f32[1,8,512], index: 7, kind: output, shape index: {}]
  %s8 = sld [smem:[#allocation0]]
  $region38: #{tpu_custom_call.1} parent=0
    _
  %s10 = ssub.s32 1, %s8
  %s11 = scalar_select 0, %s10, %s8
  $region1: #{tpu_custom_call.1} parent=0
    #allocation2 [shape = 'u8[16384]{0}', space=vmem, size = 0x4000, scoped, tag = 'output window, operand 0, single buffered']
    #allocation3 [shape = 's32[1]{0}', space=sflag, size = 0x4, scoped, tag = 'scoped memory for tpu_custom_call.1']
    %12 = vsyncpa [#allocation3], 0
    // Predicated region
    $region2: #{tpu_custom_call.1} parent=1 // pred_check
      _
    $region3: #{tpu_custom_call.1} parent=1 // pred_check_branch
      %14 = sbr.rel (0) target = $region5
    $region4: #{tpu_custom_call.1} parent=1 // pred_region
      _
    $region5: #{tpu_custom_call.1} parent=1 // pred_fallthru
      _
    // Predicated region
    $region6: #{tpu_custom_call.1} parent=1 // pred_check
      _
    $region7: #{tpu_custom_call.1} parent=1 // pred_check_branch
      %16 = sbr.rel (0) target = $region9
    $region8: #{tpu_custom_call.1} parent=1 // pred_region
      _
    $region9: #{tpu_custom_call.1} parent=1 // pred_fallthru
      _
    // Predicated region
    $region10: #{tpu_custom_call.1} parent=1 // pred_check
      _
    $region11: #{tpu_custom_call.1} parent=1 // pred_check_branch
      %18 = sbr.rel (0) target = $region13
    $region12: #{tpu_custom_call.1} parent=1 // pred_region
      _
    $region13: #{tpu_custom_call.1} parent=1 // pred_fallthru
      _
    // Predicated region
    $region14: #{tpu_custom_call.1} parent=1 // pred_check
      _
    $region15: #{tpu_custom_call.1} parent=1 // pred_check_branch
      %20 = sbr.rel (0) target = $region17
    $region16: #{tpu_custom_call.1} parent=1 // pred_region
      _
    $region17: #{tpu_custom_call.1} parent=1 // pred_fallthru
      _
    // Predicated region
    $region18: #{tpu_custom_call.1} parent=1 // pred_check
      _
    $region19: #{tpu_custom_call.1} parent=1 // pred_check_branch
      %22 = sbr.rel (0) target = $region21
    $region20: #{tpu_custom_call.1} parent=1 // pred_region
      _
    $region21: #{tpu_custom_call.1} parent=1 // pred_fallthru
      _
    // Predicated region
    $region22: #{tpu_custom_call.1} parent=1 // pred_check
      _
    $region23: #{tpu_custom_call.1} parent=1 // pred_check_branch
      %24 = sbr.rel (0) target = $region25
    $region24: #{tpu_custom_call.1} parent=1 // pred_region
      _
    $region25: #{tpu_custom_call.1} parent=1 // pred_fallthru
      _
    // Predicated region
    $region26: #{tpu_custom_call.1} parent=1 // pred_check
      _
    $region27: #{tpu_custom_call.1} parent=1 // pred_check_branch
      %26 = sbr.rel (0) target = $region29
    $region28: #{tpu_custom_call.1} parent=1 // pred_region
      _
    $region29: #{tpu_custom_call.1} parent=1 // pred_fallthru
      _
    %v28 = vld [vmem:[%s0] sm:$0xff]
    %v29 = vld [vmem:[%s0 + $0x8] sm:$0xff]
    %v30 = vld [vmem:[%s1] sm:$0xf]
    %32 = vset.pattern.permute.xlu0 0
    %33 = vperm.xlu0 %32, %v30
    %v34 = vpop.permute.xlu0 %33
    %v36 = vunpack.c.l.s4 839922192
    %v37 = vunpack.c.0.s8 %v36
    %v38 = vlaneseq
    %v39 = vshrl.u32 %v38, 7
    %v40 = vsub.s32 %v37, %v39
    %v41 = vrot.slane %v34, %v40
    %v43 = vmul.f32 %v28, %v41
    %v44 = vmul.f32 %v29, %v41
    %v45 = vld [vmem:[%s2] sm:$0xf]
    %47 = vset.pattern.permute.xlu0 0
    %48 = vperm.xlu0 %47, %v45
    %v49 = vpop.permute.xlu0 %48
    %v51 = vunpack.c.l.s4 839922192
    %v52 = vunpack.c.0.s8 %v51
    %v53 = vlaneseq
    %v54 = vshrl.u32 %v53, 7
    %v55 = vsub.s32 %v52, %v54
    %v56 = vrot.slane %v49, %v55
    %v58 = vadd.f32 %v43, %v56
    %v59 = vadd.f32 %v44, %v56
    %v60 = vmax.f32 %v58, 0.0
    %v61 = vmax.f32 %v59, 0.0
    %v62 = vld [vmem:[%s3] sm:$0xff]
    %v63 = vld [vmem:[%s3 + $0x8] sm:$0xff]
    %v64 = vld [vmem:[%s3 + $0x10] sm:$0xff]
    %v65 = vld [vmem:[%s3 + $0x18] sm:$0xff]
    %67 = vset.pattern.permute.xlu0 0
    %68 = vperm.xlu0 %67, %v62
    %v69 = vpop.permute.xlu0 %68
    %72 = vset.pattern.permute.xlu0 0
    %73 = vperm.xlu0 %72, %v63
    %v74 = vpop.permute.xlu0 %73
    %77 = vset.pattern.permute.xlu0 0
    %78 = vperm.xlu0 %77, %v64
    %v79 = vpop.permute.xlu0 %78
    %82 = vset.pattern.permute.xlu0 0
    %83 = vperm.xlu0 %82, %v65
    %v84 = vpop.permute.xlu0 %83
    %v88 = vlaneseq
    %v89 = vshrl.u32 %v88, 7
    %v90 = vsub.s32 0, %v89
    %v91 = vrot.slane %v60, %v90
    %v92 = vlaneseq
    %v93 = vshrl.u32 %v92, 7
    %v94 = vsub.s32 4, %v93
    %v95 = vrot.slane %v60, %v94
    %v96 = vlaneseq
    %v97 = vshrl.u32 %v96, 7
    %v98 = vsub.s32 0, %v97
    %v99 = vrot.slane %v61, %v98
    %v100 = vlaneseq
    %v101 = vshrl.u32 %v100, 7
    %v102 = vsub.s32 4, %v101
    %v103 = vrot.slane %v61, %v102
    %v108 = vlaneseq
    %v109 = vshrl.u32 %v108, 7
    %v110 = vsub.s32 0, %v109
    %v111 = vrot.slane %v91, %v110
    %v112 = vlaneseq
    %v113 = vshrl.u32 %v112, 7
    %v114 = vsub.s32 0, %v113
    %v115 = vrot.slane %v95, %v114
    %v116 = vlaneseq
    %v117 = vshrl.u32 %v116, 7
    %v118 = vsub.s32 0, %v117
    %v119 = vrot.slane %v99, %v118
    %v120 = vlaneseq
    %v121 = vshrl.u32 %v120, 7
    %v122 = vsub.s32 0, %v121
    %v123 = vrot.slane %v103, %v122
    %v124 = vmul.f32 %v69, %v111
    %v125 = vmul.f32 %v69, %v115
    %v126 = vmul.f32 %v69, %v119
    %v127 = vmul.f32 %v69, %v123
    %v128 = vmul.f32 %v74, %v111
    %v129 = vmul.f32 %v74, %v115
    %v130 = vmul.f32 %v74, %v119
    %v131 = vmul.f32 %v74, %v123
    %v132 = vmul.f32 %v79, %v111
    %v133 = vmul.f32 %v79, %v115
    %v134 = vmul.f32 %v79, %v119
    %v135 = vmul.f32 %v79, %v123
    %v136 = vmul.f32 %v84, %v111
    %v137 = vmul.f32 %v84, %v115
    %v138 = vmul.f32 %v84, %v119
    %v139 = vmul.f32 %v84, %v123
    %140 = vset.pattern.permute.xlu0 1
    %141 = vperm.xlu0 %140, %v62
    %v142 = vpop.permute.xlu0 %141
    %144 = vset.pattern.permute.xlu0 1
    %145 = vperm.xlu0 %144, %v63
    %v146 = vpop.permute.xlu0 %145
    %148 = vset.pattern.permute.xlu0 1
    %149 = vperm.xlu0 %148, %v64
    %v150 = vpop.permute.xlu0 %149
    %152 = vset.pattern.permute.xlu0 1
    %153 = vperm.xlu0 %152, %v65
    %v154 = vpop.permute.xlu0 %153
    %v156 = vlaneseq
    %v157 = vshrl.u32 %v156, 7
    %v158 = vsub.s32 1, %v157
    %v159 = vrot.slane %v60, %v158
    %v160 = vlaneseq
    %v161 = vshrl.u32 %v160, 7
    %v162 = vsub.s32 5, %v161
    %v163 = vrot.slane %v60, %v162
    %v164 = vlaneseq
    %v165 = vshrl.u32 %v164, 7
    %v166 = vsub.s32 1, %v165
    %v167 = vrot.slane %v61, %v166
    %v168 = vlaneseq
    %v169 = vshrl.u32 %v168, 7
    %v170 = vsub.s32 5, %v169
    %v171 = vrot.slane %v61, %v170
    %v176 = vlaneseq
    %v177 = vshrl.u32 %v176, 7
    %v178 = vsub.s32 1, %v177
    %v179 = vrot.slane %v159, %v178
    %v180 = vlaneseq
    %v181 = vshrl.u32 %v180, 7
    %v182 = vsub.s32 1, %v181
    %v183 = vrot.slane %v163, %v182
    %v184 = vlaneseq
    %v185 = vshrl.u32 %v184, 7
    %v186 = vsub.s32 1, %v185
    %v187 = vrot.slane %v167, %v186
    %v188 = vlaneseq
    %v189 = vshrl.u32 %v188, 7
    %v190 = vsub.s32 1, %v189
    %v191 = vrot.slane %v171, %v190
    %v192 = vmul.f32 %v142, %v179
    %v193 = vmul.f32 %v142, %v183
    %v194 = vmul.f32 %v142, %v187
    %v195 = vmul.f32 %v142, %v191
    %v196 = vmul.f32 %v146, %v179
    %v197 = vmul.f32 %v146, %v183
    %v198 = vmul.f32 %v146, %v187
    %v199 = vmul.f32 %v146, %v191
    %v200 = vmul.f32 %v150, %v179
    %v201 = vmul.f32 %v150, %v183
    %v202 = vmul.f32 %v150, %v187
    %v203 = vmul.f32 %v150, %v191
    %v204 = vmul.f32 %v154, %v179
    %v205 = vmul.f32 %v154, %v183
    %v206 = vmul.f32 %v154, %v187
    %v207 = vmul.f32 %v154, %v191
    %v208 = vadd.f32 %v124, %v192
    %v209 = vadd.f32 %v125, %v193
    %v210 = vadd.f32 %v126, %v194
    %v211 = vadd.f32 %v127, %v195
    %v212 = vadd.f32 %v128, %v196
    %v213 = vadd.f32 %v129, %v197
    %v214 = vadd.f32 %v130, %v198
    %v215 = vadd.f32 %v131, %v199
    %v216 = vadd.f32 %v132, %v200
    %v217 = vadd.f32 %v133, %v201
    %v218 = vadd.f32 %v134, %v202
    %v219 = vadd.f32 %v135, %v203
    %v220 = vadd.f32 %v136, %v204
    %v221 = vadd.f32 %v137, %v205
    %v222 = vadd.f32 %v138, %v206
    %v223 = vadd.f32 %v139, %v207
    %224 = vset.pattern.permute.xlu0 2
    %225 = vperm.xlu0 %224, %v62
    %v226 = vpop.permute.xlu0 %225
    %228 = vset.pattern.permute.xlu0 2
    %229 = vperm.xlu0 %228, %v63
    %v230 = vpop.permute.xlu0 %229
    %232 = vset.pattern.permute.xlu0 2
    %233 = vperm.xlu0 %232, %v64
    %v234 = vpop.permute.xlu0 %233
    %236 = vset.pattern.permute.xlu0 2
    %237 = vperm.xlu0 %236, %v65
    %v238 = vpop.permute.xlu0 %237
    %v240 = vlaneseq
    %v241 = vshrl.u32 %v240, 7
    %v242 = vsub.s32 2, %v241
    %v243 = vrot.slane %v60, %v242
    %v244 = vlaneseq
    %v245 = vshrl.u32 %v244, 7
    %v246 = vsub.s32 6, %v245
    %v247 = vrot.slane %v60, %v246
    %v248 = vlaneseq
    %v249 = vshrl.u32 %v248, 7
    %v250 = vsub.s32 2, %v249
    %v251 = vrot.slane %v61, %v250
    %v252 = vlaneseq
    %v253 = vshrl.u32 %v252, 7
    %v254 = vsub.s32 6, %v253
    %v255 = vrot.slane %v61, %v254
    %v260 = vlaneseq
    %v261 = vshrl.u32 %v260, 7
    %v262 = vsub.s32 2, %v261
    %v263 = vrot.slane %v243, %v262
    %v264 = vlaneseq
    %v265 = vshrl.u32 %v264, 7
    %v266 = vsub.s32 2, %v265
    %v267 = vrot.slane %v247, %v266
    %v268 = vlaneseq
    %v269 = vshrl.u32 %v268, 7
    %v270 = vsub.s32 2, %v269
    %v271 = vrot.slane %v251, %v270
    %v272 = vlaneseq
    %v273 = vshrl.u32 %v272, 7
    %v274 = vsub.s32 2, %v273
    %v275 = vrot.slane %v255, %v274
    %v276 = vmul.f32 %v226, %v263
    %v277 = vmul.f32 %v226, %v267
    %v278 = vmul.f32 %v226, %v271
    %v279 = vmul.f32 %v226, %v275
    %v280 = vmul.f32 %v230, %v263
    %v281 = vmul.f32 %v230, %v267
    %v282 = vmul.f32 %v230, %v271
    %v283 = vmul.f32 %v230, %v275
    %v284 = vmul.f32 %v234, %v263
    %v285 = vmul.f32 %v234, %v267
    %v286 = vmul.f32 %v234, %v271
    %v287 = vmul.f32 %v234, %v275
    %v288 = vmul.f32 %v238, %v263
    %v289 = vmul.f32 %v238, %v267
    %v290 = vmul.f32 %v238, %v271
    %v291 = vmul.f32 %v238, %v275
    %v292 = vadd.f32 %v208, %v276
    %v293 = vadd.f32 %v209, %v277
    %v294 = vadd.f32 %v210, %v278
    %v295 = vadd.f32 %v211, %v279
    %v296 = vadd.f32 %v212, %v280
    %v297 = vadd.f32 %v213, %v281
    %v298 = vadd.f32 %v214, %v282
    %v299 = vadd.f32 %v215, %v283
    %v300 = vadd.f32 %v216, %v284
    %v301 = vadd.f32 %v217, %v285
    %v302 = vadd.f32 %v218, %v286
    %v303 = vadd.f32 %v219, %v287
    %v304 = vadd.f32 %v220, %v288
    %v305 = vadd.f32 %v221, %v289
    %v306 = vadd.f32 %v222, %v290
    %v307 = vadd.f32 %v223, %v291
    %308 = vset.pattern.permute.xlu0 3
    %309 = vperm.xlu0 %308, %v62
    %v310 = vpop.permute.xlu0 %309
    %312 = vset.pattern.permute.xlu0 3
    %313 = vperm.xlu0 %312, %v63
    %v314 = vpop.permute.xlu0 %313
    %316 = vset.pattern.permute.xlu0 3
    %317 = vperm.xlu0 %316, %v64
    %v318 = vpop.permute.xlu0 %317
    %320 = vset.pattern.permute.xlu0 3
    %321 = vperm.xlu0 %320, %v65
    %v322 = vpop.permute.xlu0 %321
    %v324 = vlaneseq
    %v325 = vshrl.u32 %v324, 7
    %v326 = vsub.s32 3, %v325
    %v327 = vrot.slane %v60, %v326
    %v328 = vlaneseq
    %v329 = vshrl.u32 %v328, 7
    %v330 = vsub.s32 7, %v329
    %v331 = vrot.slane %v60, %v330
    %v332 = vlaneseq
    %v333 = vshrl.u32 %v332, 7
    %v334 = vsub.s32 3, %v333
    %v335 = vrot.slane %v61, %v334
    %v336 = vlaneseq
    %v337 = vshrl.u32 %v336, 7
    %v338 = vsub.s32 7, %v337
    %v339 = vrot.slane %v61, %v338
    %v344 = vlaneseq
    %v345 = vshrl.u32 %v344, 7
    %v346 = vsub.s32 3, %v345
    %v347 = vrot.slane %v327, %v346
    %v348 = vlaneseq
    %v349 = vshrl.u32 %v348, 7
    %v350 = vsub.s32 3, %v349
    %v351 = vrot.slane %v331, %v350
    %v352 = vlaneseq
    %v353 = vshrl.u32 %v352, 7
    %v354 = vsub.s32 3, %v353
    %v355 = vrot.slane %v335, %v354
    %v356 = vlaneseq
    %v357 = vshrl.u32 %v356, 7
    %v358 = vsub.s32 3, %v357
    %v359 = vrot.slane %v339, %v358
    %v360 = vmul.f32 %v310, %v347
    %v361 = vmul.f32 %v310, %v351
    %v362 = vmul.f32 %v310, %v355
    %v363 = vmul.f32 %v310, %v359
    %v364 = vmul.f32 %v314, %v347
    %v365 = vmul.f32 %v314, %v351
    %v366 = vmul.f32 %v314, %v355
    %v367 = vmul.f32 %v314, %v359
    %v368 = vmul.f32 %v318, %v347
    %v369 = vmul.f32 %v318, %v351
    %v370 = vmul.f32 %v318, %v355
    %v371 = vmul.f32 %v318, %v359
    %v372 = vmul.f32 %v322, %v347
    %v373 = vmul.f32 %v322, %v351
    %v374 = vmul.f32 %v322, %v355
    %v375 = vmul.f32 %v322, %v359
    %v376 = vadd.f32 %v292, %v360
    %v377 = vadd.f32 %v293, %v361
    %v378 = vadd.f32 %v294, %v362
    %v379 = vadd.f32 %v295, %v363
    %v380 = vadd.f32 %v296, %v364
    %v381 = vadd.f32 %v297, %v365
    %v382 = vadd.f32 %v298, %v366
    %v383 = vadd.f32 %v299, %v367
    %v384 = vadd.f32 %v300, %v368
    %v385 = vadd.f32 %v301, %v369
    %v386 = vadd.f32 %v302, %v370
    %v387 = vadd.f32 %v303, %v371
    %v388 = vadd.f32 %v304, %v372
    %v389 = vadd.f32 %v305, %v373
    %v390 = vadd.f32 %v306, %v374
    %v391 = vadd.f32 %v307, %v375
    %v392 = vld [vmem:[%s4] sm:$0xff]
    %v393 = vld [vmem:[%s4 + $0x8] sm:$0xff]
    %v394 = vld [vmem:[%s4 + $0x10] sm:$0xff]
    %v395 = vld [vmem:[%s4 + $0x18] sm:$0xff]
    %397 = vset.pattern.permute.xlu0 0
    %398 = vperm.xlu0 %397, %v392
    %v399 = vpop.permute.xlu0 %398
    %402 = vset.pattern.permute.xlu0 0
    %403 = vperm.xlu0 %402, %v393
    %v404 = vpop.permute.xlu0 %403
    %407 = vset.pattern.permute.xlu0 0
    %408 = vperm.xlu0 %407, %v394
    %v409 = vpop.permute.xlu0 %408
    %412 = vset.pattern.permute.xlu0 0
    %413 = vperm.xlu0 %412, %v395
    %v414 = vpop.permute.xlu0 %413
    %v416 = vadd.f32 %v376, %v399
    %v417 = vadd.f32 %v377, %v399
    %v418 = vadd.f32 %v378, %v399
    %v419 = vadd.f32 %v379, %v399
    %v420 = vadd.f32 %v380, %v404
    %v421 = vadd.f32 %v381, %v404
    %v422 = vadd.f32 %v382, %v404
    %v423 = vadd.f32 %v383, %v404
    %v424 = vadd.f32 %v384, %v409
    %v425 = vadd.f32 %v385, %v409
    %v426 = vadd.f32 %v386, %v409
    %v427 = vadd.f32 %v387, %v409
    %v428 = vadd.f32 %v388, %v414
    %v429 = vadd.f32 %v389, %v414
    %v430 = vadd.f32 %v390, %v414
    %v431 = vadd.f32 %v391, %v414
    %v432 = vmax.f32 %v416, 0.0
    %v433 = vmax.f32 %v417, 0.0
    %v434 = vmax.f32 %v418, 0.0
    %v435 = vmax.f32 %v419, 0.0
    %v436 = vmax.f32 %v420, 0.0
    %v437 = vmax.f32 %v421, 0.0
    %v438 = vmax.f32 %v422, 0.0
    %v439 = vmax.f32 %v423, 0.0
    %v440 = vmax.f32 %v424, 0.0
    %v441 = vmax.f32 %v425, 0.0
    %v442 = vmax.f32 %v426, 0.0
    %v443 = vmax.f32 %v427, 0.0
    %v444 = vmax.f32 %v428, 0.0
    %v445 = vmax.f32 %v429, 0.0
    %v446 = vmax.f32 %v430, 0.0
    %v447 = vmax.f32 %v431, 0.0
    %448 = vrot.lane.b32.xlu0 %v432, 17
    %v449 = vpop.permute.xlu0 %448
    %450 = vrot.lane.b32.xlu0 %v436, 17
    %v451 = vpop.permute.xlu0 %450
    %452 = vrot.lane.b32.xlu0 %v440, 17
    %v453 = vpop.permute.xlu0 %452
    %454 = vrot.lane.b32.xlu0 %v444, 17
    %v455 = vpop.permute.xlu0 %454
    %456 = vrot.lane.b32.xlu0 %v433, 17
    %v457 = vpop.permute.xlu0 %456
    %458 = vrot.lane.b32.xlu0 %v437, 17
    %v459 = vpop.permute.xlu0 %458
    %460 = vrot.lane.b32.xlu0 %v441, 17
    %v461 = vpop.permute.xlu0 %460
    %462 = vrot.lane.b32.xlu0 %v445, 17
    %v463 = vpop.permute.xlu0 %462
    %464 = vrot.lane.b32.xlu0 %v434, 17
    %v465 = vpop.permute.xlu0 %464
    %466 = vrot.lane.b32.xlu0 %v438, 17
    %v467 = vpop.permute.xlu0 %466
    %468 = vrot.lane.b32.xlu0 %v442, 17
    %v469 = vpop.permute.xlu0 %468
    %470 = vrot.lane.b32.xlu0 %v446, 17
    %v471 = vpop.permute.xlu0 %470
    %472 = vrot.lane.b32.xlu0 %v435, 17
    %v473 = vpop.permute.xlu0 %472
    %474 = vrot.lane.b32.xlu0 %v439, 17
    %v475 = vpop.permute.xlu0 %474
    %476 = vrot.lane.b32.xlu0 %v443, 17
    %v477 = vpop.permute.xlu0 %476
    %478 = vrot.lane.b32.xlu0 %v447, 17
    %v479 = vpop.permute.xlu0 %478
    %v480 = vlaneseq
    %v481 = vand.u32 %v480, 127
    %vm482 = vcmp.lt.s32.totalorder %v481, 17
    %v483 = vsel %vm482, %v465, %v473
    %v484 = vsel %vm482, %v467, %v475
    %v485 = vsel %vm482, %v469, %v477
    %v486 = vsel %vm482, %v471, %v479
    %v487 = vsel %vm482, %v457, %v465
    %v488 = vsel %vm482, %v459, %v467
    %v489 = vsel %vm482, %v461, %v469
    %v490 = vsel %vm482, %v463, %v471
    %v491 = vsel %vm482, %v449, %v457
    %v492 = vsel %vm482, %v451, %v459
    %v493 = vsel %vm482, %v453, %v461
    %v494 = vsel %vm482, %v455, %v463
    %v495 = vsel %vm482, %v473, %v449
    %v496 = vsel %vm482, %v475, %v451
    %v497 = vsel %vm482, %v477, %v453
    %v498 = vsel %vm482, %v479, %v455
    %v499 = vld [vmem:[%s6] ss:$8 sm:$0xf]
    %v501 = vlaneseq
    %v502 = vshrl.u32 %v501, 7
    %v503 = vsub.s32 0, %v502
    %v504 = vrot.slane %v499, %v503
    %v505 = vlaneseq
    %v506 = vshrl.u32 %v505, 7
    %v507 = vsub.s32 1, %v506
    %v508 = vrot.slane %v499, %v507
    %v509 = vlaneseq
    %v510 = vshrl.u32 %v509, 7
    %v511 = vsub.s32 2, %v510
    %v512 = vrot.slane %v499, %v511
    %v513 = vlaneseq
    %v514 = vshrl.u32 %v513, 7
    %v515 = vsub.s32 3, %v514
    %v516 = vrot.slane %v499, %v515
    %v521 = vmul.f32 %v495, %v504
    %v522 = vmul.f32 %v491, %v508
    %v523 = vmul.f32 %v487, %v512
    %v524 = vmul.f32 %v483, %v516
    %v525 = vmul.f32 %v496, %v504
    %v526 = vmul.f32 %v492, %v508
    %v527 = vmul.f32 %v488, %v512
    %v528 = vmul.f32 %v484, %v516
    %v529 = vmul.f32 %v497, %v504
    %v530 = vmul.f32 %v493, %v508
    %v531 = vmul.f32 %v489, %v512
    %v532 = vmul.f32 %v485, %v516
    %v533 = vmul.f32 %v498, %v504
    %v534 = vmul.f32 %v494, %v508
    %v535 = vmul.f32 %v490, %v512
    %v536 = vmul.f32 %v486, %v516
    %v537 = vpack.c.bf16 %v525, %v521
    %v538 = vpack.c.bf16 %v526, %v522
    %v539 = vpack.c.bf16 %v527, %v523
    %v540 = vpack.c.bf16 %v528, %v524
    %v541 = vpack.c.bf16 %v533, %v529
    %v542 = vpack.c.bf16 %v534, %v530
    %v543 = vpack.c.bf16 %v535, %v531
    %v544 = vpack.c.bf16 %v536, %v532
    %545 = vrot.lane.b32.xlu0 %v432, 16
    %v546 = vpop.permute.xlu0 %545
    %547 = vrot.lane.b32.xlu0 %v436, 16
    %v548 = vpop.permute.xlu0 %547
    %549 = vrot.lane.b32.xlu0 %v440, 16
    %v550 = vpop.permute.xlu0 %549
    %551 = vrot.lane.b32.xlu0 %v444, 16
    %v552 = vpop.permute.xlu0 %551
    %553 = vrot.lane.b32.xlu0 %v433, 16
    %v554 = vpop.permute.xlu0 %553
    %555 = vrot.lane.b32.xlu0 %v437, 16
    %v556 = vpop.permute.xlu0 %555
    %557 = vrot.lane.b32.xlu0 %v441, 16
    %v558 = vpop.permute.xlu0 %557
    %559 = vrot.lane.b32.xlu0 %v445, 16
    %v560 = vpop.permute.xlu0 %559
    %561 = vrot.lane.b32.xlu0 %v434, 16
    %v562 = vpop.permute.xlu0 %561
    %563 = vrot.lane.b32.xlu0 %v438, 16
    %v564 = vpop.permute.xlu0 %563
    %565 = vrot.lane.b32.xlu0 %v442, 16
    %v566 = vpop.permute.xlu0 %565
    %567 = vrot.lane.b32.xlu0 %v446, 16
    %v568 = vpop.permute.xlu0 %567
    %569 = vrot.lane.b32.xlu0 %v435, 16
    %v570 = vpop.permute.xlu0 %569
    %571 = vrot.lane.b32.xlu0 %v439, 16
    %v572 = vpop.permute.xlu0 %571
    %573 = vrot.lane.b32.xlu0 %v443, 16
    %v574 = vpop.permute.xlu0 %573
    %575 = vrot.lane.b32.xlu0 %v447, 16
    %v576 = vpop.permute.xlu0 %575
    %vm577 = vcmp.lt.s32.totalorder %v481, 16
    %v578 = vsel %vm577, %v562, %v570
    %v579 = vsel %vm577, %v564, %v572
    %v580 = vsel %vm577, %v566, %v574
    %v581 = vsel %vm577, %v568, %v576
    %v582 = vsel %vm577, %v554, %v562
    %v583 = vsel %vm577, %v556, %v564
    %v584 = vsel %vm577, %v558, %v566
    %v585 = vsel %vm577, %v560, %v568
    %v586 = vsel %vm577, %v546, %v554
    %v587 = vsel %vm577, %v548, %v556
    %v588 = vsel %vm577, %v550, %v558
    %v589 = vsel %vm577, %v552, %v560
    %v590 = vsel %vm577, %v570, %v546
    %v591 = vsel %vm577, %v572, %v548
    %v592 = vsel %vm577, %v574, %v550
    %v593 = vsel %vm577, %v576, %v552
    %s594 = scalar_lea.vmem %s6, 1
    %v595 = vld [vmem:[%s594] ss:$8 sm:$0xf]
    %v597 = vlaneseq
    %v598 = vshrl.u32 %v597, 7
    %v599 = vsub.s32 0, %v598
    %v600 = vrot.slane %v595, %v599
    %v601 = vlaneseq
    %v602 = vshrl.u32 %v601, 7
    %v603 = vsub.s32 1, %v602
    %v604 = vrot.slane %v595, %v603
    %v605 = vlaneseq
    %v606 = vshrl.u32 %v605, 7
    %v607 = vsub.s32 2, %v606
    %v608 = vrot.slane %v595, %v607
    %v609 = vlaneseq
    %v610 = vshrl.u32 %v609, 7
    %v611 = vsub.s32 3, %v610
    %v612 = vrot.slane %v595, %v611
    %v617 = vmul.f32 %v590, %v600
    %v618 = vmul.f32 %v586, %v604
    %v619 = vmul.f32 %v582, %v608
    %v620 = vmul.f32 %v578, %v612
    %v621 = vmul.f32 %v591, %v600
    %v622 = vmul.f32 %v587, %v604
    %v623 = vmul.f32 %v583, %v608
    %v624 = vmul.f32 %v579, %v612
    %v625 = vmul.f32 %v592, %v600
    %v626 = vmul.f32 %v588, %v604
    %v627 = vmul.f32 %v584, %v608
    %v628 = vmul.f32 %v580, %v612
    %v629 = vmul.f32 %v593, %v600
    %v630 = vmul.f32 %v589, %v604
    %v631 = vmul.f32 %v585, %v608
    %v632 = vmul.f32 %v581, %v612
    %v633 = vpack.c.bf16 %v621, %v617
    %v634 = vpack.c.bf16 %v622, %v618
    %v635 = vpack.c.bf16 %v623, %v619
    %v636 = vpack.c.bf16 %v624, %v620
    %v637 = vpack.c.bf16 %v629, %v625
    %v638 = vpack.c.bf16 %v630, %v626
    %v639 = vpack.c.bf16 %v631, %v627
    %v640 = vpack.c.bf16 %v632, %v628
    %641 = vrot.lane.b32.xlu0 %v432, 15
    %v642 = vpop.permute.xlu0 %641
    %643 = vrot.lane.b32.xlu0 %v436, 15
    %v644 = vpop.permute.xlu0 %643
    %645 = vrot.lane.b32.xlu0 %v440, 15
    %v646 = vpop.permute.xlu0 %645
    %647 = vrot.lane.b32.xlu0 %v444, 15
    %v648 = vpop.permute.xlu0 %647
    %649 = vrot.lane.b32.xlu0 %v433, 15
    %v650 = vpop.permute.xlu0 %649
    %651 = vrot.lane.b32.xlu0 %v437, 15
    %v652 = vpop.permute.xlu0 %651
    %653 = vrot.lane.b32.xlu0 %v441, 15
    %v654 = vpop.permute.xlu0 %653
    %655 = vrot.lane.b32.xlu0 %v445, 15
    %v656 = vpop.permute.xlu0 %655
    %657 = vrot.lane.b32.xlu0 %v434, 15
    %v658 = vpop.permute.xlu0 %657
    %659 = vrot.lane.b32.xlu0 %v438, 15
    %v660 = vpop.permute.xlu0 %659
    %661 = vrot.lane.b32.xlu0 %v442, 15
    %v662 = vpop.permute.xlu0 %661
    %663 = vrot.lane.b32.xlu0 %v446, 15
    %v664 = vpop.permute.xlu0 %663
    %665 = vrot.lane.b32.xlu0 %v435, 15
    %v666 = vpop.permute.xlu0 %665
    %667 = vrot.lane.b32.xlu0 %v439, 15
    %v668 = vpop.permute.xlu0 %667
    %669 = vrot.lane.b32.xlu0 %v443, 15
    %v670 = vpop.permute.xlu0 %669
    %671 = vrot.lane.b32.xlu0 %v447, 15
    %v672 = vpop.permute.xlu0 %671
    %vm673 = vcmp.lt.s32.totalorder %v481, 15
    %v674 = vsel %vm673, %v658, %v666
    %v675 = vsel %vm673, %v660, %v668
    %v676 = vsel %vm673, %v662, %v670
    %v677 = vsel %vm673, %v664, %v672
    %v678 = vsel %vm673, %v650, %v658
    %v679 = vsel %vm673, %v652, %v660
    %v680 = vsel %vm673, %v654, %v662
    %v681 = vsel %vm673, %v656, %v664
    %v682 = vsel %vm673, %v642, %v650
    %v683 = vsel %vm673, %v644, %v652
    %v684 = vsel %vm673, %v646, %v654
    %v685 = vsel %vm673, %v648, %v656
    %v686 = vsel %vm673, %v666, %v642
    %v687 = vsel %vm673, %v668, %v644
    %v688 = vsel %vm673, %v670, %v646
    %v689 = vsel %vm673, %v672, %v648
    %s690 = scalar_lea.vmem %s6, 2
    %v691 = vld [vmem:[%s690] ss:$8 sm:$0xf]
    %v693 = vlaneseq
    %v694 = vshrl.u32 %v693, 7
    %v695 = vsub.s32 0, %v694
    %v696 = vrot.slane %v691, %v695
    %v697 = vlaneseq
    %v698 = vshrl.u32 %v697, 7
    %v699 = vsub.s32 1, %v698
    %v700 = vrot.slane %v691, %v699
    %v701 = vlaneseq
    %v702 = vshrl.u32 %v701, 7
    %v703 = vsub.s32 2, %v702
    %v704 = vrot.slane %v691, %v703
    %v705 = vlaneseq
    %v706 = vshrl.u32 %v705, 7
    %v707 = vsub.s32 3, %v706
    %v708 = vrot.slane %v691, %v707
    %v713 = vmul.f32 %v686, %v696
    %v714 = vmul.f32 %v682, %v700
    %v715 = vmul.f32 %v678, %v704
    %v716 = vmul.f32 %v674, %v708
    %v717 = vmul.f32 %v687, %v696
    %v718 = vmul.f32 %v683, %v700
    %v719 = vmul.f32 %v679, %v704
    %v720 = vmul.f32 %v675, %v708
    %v721 = vmul.f32 %v688, %v696
    %v722 = vmul.f32 %v684, %v700
    %v723 = vmul.f32 %v680, %v704
    %v724 = vmul.f32 %v676, %v708
    %v725 = vmul.f32 %v689, %v696
    %v726 = vmul.f32 %v685, %v700
    %v727 = vmul.f32 %v681, %v704
    %v728 = vmul.f32 %v677, %v708
    %v729 = vpack.c.bf16 %v717, %v713
    %v730 = vpack.c.bf16 %v718, %v714
    %v731 = vpack.c.bf16 %v719, %v715
    %v732 = vpack.c.bf16 %v720, %v716
    %v733 = vpack.c.bf16 %v725, %v721
    %v734 = vpack.c.bf16 %v726, %v722
    %v735 = vpack.c.bf16 %v727, %v723
    %v736 = vpack.c.bf16 %v728, %v724
    %737 = vrot.lane.b32.xlu0 %v432, 1
    %v738 = vpop.permute.xlu0 %737
    %739 = vrot.lane.b32.xlu0 %v436, 1
    %v740 = vpop.permute.xlu0 %739
    %741 = vrot.lane.b32.xlu0 %v440, 1
    %v742 = vpop.permute.xlu0 %741
    %743 = vrot.lane.b32.xlu0 %v444, 1
    %v744 = vpop.permute.xlu0 %743
    %745 = vrot.lane.b32.xlu0 %v433, 1
    %v746 = vpop.permute.xlu0 %745
    %747 = vrot.lane.b32.xlu0 %v437, 1
    %v748 = vpop.permute.xlu0 %747
    %749 = vrot.lane.b32.xlu0 %v441, 1
    %v750 = vpop.permute.xlu0 %749
    %751 = vrot.lane.b32.xlu0 %v445, 1
    %v752 = vpop.permute.xlu0 %751
    %753 = vrot.lane.b32.xlu0 %v434, 1
    %v754 = vpop.permute.xlu0 %753
    %755 = vrot.lane.b32.xlu0 %v438, 1
    %v756 = vpop.permute.xlu0 %755
    %757 = vrot.lane.b32.xlu0 %v442, 1
    %v758 = vpop.permute.xlu0 %757
    %759 = vrot.lane.b32.xlu0 %v446, 1
    %v760 = vpop.permute.xlu0 %759
    %761 = vrot.lane.b32.xlu0 %v435, 1
    %v762 = vpop.permute.xlu0 %761
    %763 = vrot.lane.b32.xlu0 %v439, 1
    %v764 = vpop.permute.xlu0 %763
    %765 = vrot.lane.b32.xlu0 %v443, 1
    %v766 = vpop.permute.xlu0 %765
    %767 = vrot.lane.b32.xlu0 %v447, 1
    %v768 = vpop.permute.xlu0 %767
    %vm769 = vcmp.lt.s32.totalorder %v481, 1
    %v770 = vsel %vm769, %v754, %v762
    %v771 = vsel %vm769, %v756, %v764
    %v772 = vsel %vm769, %v758, %v766
    %v773 = vsel %vm769, %v760, %v768
    %v774 = vsel %vm769, %v746, %v754
    %v775 = vsel %vm769, %v748, %v756
    %v776 = vsel %vm769, %v750, %v758
    %v777 = vsel %vm769, %v752, %v760
    %v778 = vsel %vm769, %v738, %v746
    %v779 = vsel %vm769, %v740, %v748
    %v780 = vsel %vm769, %v742, %v750
    %v781 = vsel %vm769, %v744, %v752
    %v782 = vsel %vm769, %v762, %v738
    %v783 = vsel %vm769, %v764, %v740
    %v784 = vsel %vm769, %v766, %v742
    %v785 = vsel %vm769, %v768, %v744
    %s786 = scalar_lea.vmem %s6, 3
    %v787 = vld [vmem:[%s786] ss:$8 sm:$0xf]
    %v789 = vlaneseq
    %v790 = vshrl.u32 %v789, 7
    %v791 = vsub.s32 0, %v790
    %v792 = vrot.slane %v787, %v791
    %v793 = vlaneseq
    %v794 = vshrl.u32 %v793, 7
    %v795 = vsub.s32 1, %v794
    %v796 = vrot.slane %v787, %v795
    %v797 = vlaneseq
    %v798 = vshrl.u32 %v797, 7
    %v799 = vsub.s32 2, %v798
    %v800 = vrot.slane %v787, %v799
    %v801 = vlaneseq
    %v802 = vshrl.u32 %v801, 7
    %v803 = vsub.s32 3, %v802
    %v804 = vrot.slane %v787, %v803
    %v809 = vmul.f32 %v782, %v792
    %v810 = vmul.f32 %v778, %v796
    %v811 = vmul.f32 %v774, %v800
    %v812 = vmul.f32 %v770, %v804
    %v813 = vmul.f32 %v783, %v792
    %v814 = vmul.f32 %v779, %v796
    %v815 = vmul.f32 %v775, %v800
    %v816 = vmul.f32 %v771, %v804
    %v817 = vmul.f32 %v784, %v792
    %v818 = vmul.f32 %v780, %v796
    %v819 = vmul.f32 %v776, %v800
    %v820 = vmul.f32 %v772, %v804
    %v821 = vmul.f32 %v785, %v792
    %v822 = vmul.f32 %v781, %v796
    %v823 = vmul.f32 %v777, %v800
    %v824 = vmul.f32 %v773, %v804
    %v825 = vpack.c.bf16 %v813, %v809
    %v826 = vpack.c.bf16 %v814, %v810
    %v827 = vpack.c.bf16 %v815, %v811
    %v828 = vpack.c.bf16 %v816, %v812
    %v829 = vpack.c.bf16 %v821, %v817
    %v830 = vpack.c.bf16 %v822, %v818
    %v831 = vpack.c.bf16 %v823, %v819
    %v832 = vpack.c.bf16 %v824, %v820
    %v833 = vpack.c.bf16 %v436, %v432
    %v834 = vpack.c.bf16 %v437, %v433
    %v835 = vpack.c.bf16 %v438, %v434
    %v836 = vpack.c.bf16 %v439, %v435
    %v837 = vpack.c.bf16 %v444, %v440
    %v838 = vpack.c.bf16 %v445, %v441
    %v839 = vpack.c.bf16 %v446, %v442
    %v840 = vpack.c.bf16 %v447, %v443
    %841 = vrot.lane.b32.xlu0 %v432, 127
    %v842 = vpop.permute.xlu0 %841
    %843 = vrot.lane.b32.xlu0 %v436, 127
    %v844 = vpop.permute.xlu0 %843
    %845 = vrot.lane.b32.xlu0 %v440, 127
    %v846 = vpop.permute.xlu0 %845
    %847 = vrot.lane.b32.xlu0 %v444, 127
    %v848 = vpop.permute.xlu0 %847
    %849 = vrot.lane.b32.xlu0 %v433, 127
    %v850 = vpop.permute.xlu0 %849
    %851 = vrot.lane.b32.xlu0 %v437, 127
    %v852 = vpop.permute.xlu0 %851
    %853 = vrot.lane.b32.xlu0 %v441, 127
    %v854 = vpop.permute.xlu0 %853
    %855 = vrot.lane.b32.xlu0 %v445, 127
    %v856 = vpop.permute.xlu0 %855
    %857 = vrot.lane.b32.xlu0 %v434, 127
    %v858 = vpop.permute.xlu0 %857
    %859 = vrot.lane.b32.xlu0 %v438, 127
    %v860 = vpop.permute.xlu0 %859
    %861 = vrot.lane.b32.xlu0 %v442, 127
    %v862 = vpop.permute.xlu0 %861
    %863 = vrot.lane.b32.xlu0 %v446, 127
    %v864 = vpop.permute.xlu0 %863
    %865 = vrot.lane.b32.xlu0 %v435, 127
    %v866 = vpop.permute.xlu0 %865
    %867 = vrot.lane.b32.xlu0 %v439, 127
    %v868 = vpop.permute.xlu0 %867
    %869 = vrot.lane.b32.xlu0 %v443, 127
    %v870 = vpop.permute.xlu0 %869
    %871 = vrot.lane.b32.xlu0 %v447, 127
    %v872 = vpop.permute.xlu0 %871
    %vm873 = vcmp.lt.s32.totalorder %v481, 127
    %v874 = vsel %vm873, %v858, %v866
    %v875 = vsel %vm873, %v860, %v868
    %v876 = vsel %vm873, %v862, %v870
    %v877 = vsel %vm873, %v864, %v872
    %v878 = vsel %vm873, %v850, %v858
    %v879 = vsel %vm873, %v852, %v860
    %v880 = vsel %vm873, %v854, %v862
    %v881 = vsel %vm873, %v856, %v864
    %v882 = vsel %vm873, %v842, %v850
    %v883 = vsel %vm873, %v844, %v852
    %v884 = vsel %vm873, %v846, %v854
    %v885 = vsel %vm873, %v848, %v856
    %v886 = vsel %vm873, %v866, %v842
    %v887 = vsel %vm873, %v868, %v844
    %v888 = vsel %vm873, %v870, %v846
    %v889 = vsel %vm873, %v872, %v848
    %s890 = scalar_lea.vmem %s6, 5
    %v891 = vld [vmem:[%s890] ss:$8 sm:$0xf]
    %v893 = vlaneseq
    %v894 = vshrl.u32 %v893, 7
    %v895 = vsub.s32 0, %v894
    %v896 = vrot.slane %v891, %v895
    %v897 = vlaneseq
    %v898 = vshrl.u32 %v897, 7
    %v899 = vsub.s32 1, %v898
    %v900 = vrot.slane %v891, %v899
    %v901 = vlaneseq
    %v902 = vshrl.u32 %v901, 7
    %v903 = vsub.s32 2, %v902
    %v904 = vrot.slane %v891, %v903
    %v905 = vlaneseq
    %v906 = vshrl.u32 %v905, 7
    %v907 = vsub.s32 3, %v906
    %v908 = vrot.slane %v891, %v907
    %v913 = vmul.f32 %v882, %v896
    %v914 = vmul.f32 %v878, %v900
    %v915 = vmul.f32 %v874, %v904
    %v916 = vmul.f32 %v886, %v908
    %v917 = vmul.f32 %v883, %v896
    %v918 = vmul.f32 %v879, %v900
    %v919 = vmul.f32 %v875, %v904
    %v920 = vmul.f32 %v887, %v908
    %v921 = vmul.f32 %v884, %v896
    %v922 = vmul.f32 %v880, %v900
    %v923 = vmul.f32 %v876, %v904
    %v924 = vmul.f32 %v888, %v908
    %v925 = vmul.f32 %v885, %v896
    %v926 = vmul.f32 %v881, %v900
    %v927 = vmul.f32 %v877, %v904
    %v928 = vmul.f32 %v889, %v908
    %v929 = vpack.c.bf16 %v917, %v913
    %v930 = vpack.c.bf16 %v918, %v914
    %v931 = vpack.c.bf16 %v919, %v915
    %v932 = vpack.c.bf16 %v920, %v916
    %v933 = vpack.c.bf16 %v925, %v921
    %v934 = vpack.c.bf16 %v926, %v922
    %v935 = vpack.c.bf16 %v927, %v923
    %v936 = vpack.c.bf16 %v928, %v924
    %937 = vrot.lane.b32.xlu0 %v432, 113
    %v938 = vpop.permute.xlu0 %937
    %939 = vrot.lane.b32.xlu0 %v436, 113
    %v940 = vpop.permute.xlu0 %939
    %941 = vrot.lane.b32.xlu0 %v440, 113
    %v942 = vpop.permute.xlu0 %941
    %943 = vrot.lane.b32.xlu0 %v444, 113
    %v944 = vpop.permute.xlu0 %943
    %945 = vrot.lane.b32.xlu0 %v433, 113
    %v946 = vpop.permute.xlu0 %945
    %947 = vrot.lane.b32.xlu0 %v437, 113
    %v948 = vpop.permute.xlu0 %947
    %949 = vrot.lane.b32.xlu0 %v441, 113
    %v950 = vpop.permute.xlu0 %949
    %951 = vrot.lane.b32.xlu0 %v445, 113
    %v952 = vpop.permute.xlu0 %951
    %953 = vrot.lane.b32.xlu0 %v434, 113
    %v954 = vpop.permute.xlu0 %953
    %955 = vrot.lane.b32.xlu0 %v438, 113
    %v956 = vpop.permute.xlu0 %955
    %957 = vrot.lane.b32.xlu0 %v442, 113
    %v958 = vpop.permute.xlu0 %957
    %959 = vrot.lane.b32.xlu0 %v446, 113
    %v960 = vpop.permute.xlu0 %959
    %961 = vrot.lane.b32.xlu0 %v435, 113
    %v962 = vpop.permute.xlu0 %961
    %963 = vrot.lane.b32.xlu0 %v439, 113
    %v964 = vpop.permute.xlu0 %963
    %965 = vrot.lane.b32.xlu0 %v443, 113
    %v966 = vpop.permute.xlu0 %965
    %967 = vrot.lane.b32.xlu0 %v447, 113
    %v968 = vpop.permute.xlu0 %967
    %vm969 = vcmp.lt.s32.totalorder %v481, 113
    %v970 = vsel %vm969, %v954, %v962
    %v971 = vsel %vm969, %v956, %v964
    %v972 = vsel %vm969, %v958, %v966
    %v973 = vsel %vm969, %v960, %v968
    %v974 = vsel %vm969, %v946, %v954
    %v975 = vsel %vm969, %v948, %v956
    %v976 = vsel %vm969, %v950, %v958
    %v977 = vsel %vm969, %v952, %v960
    %v978 = vsel %vm969, %v938, %v946
    %v979 = vsel %vm969, %v940, %v948
    %v980 = vsel %vm969, %v942, %v950
    %v981 = vsel %vm969, %v944, %v952
    %v982 = vsel %vm969, %v962, %v938
    %v983 = vsel %vm969, %v964, %v940
    %v984 = vsel %vm969, %v966, %v942
    %v985 = vsel %vm969, %v968, %v944
    %s986 = scalar_lea.vmem %s6, 6
    %v987 = vld [vmem:[%s986] ss:$8 sm:$0xf]
    %v989 = vlaneseq
    %v990 = vshrl.u32 %v989, 7
    %v991 = vsub.s32 0, %v990
    %v992 = vrot.slane %v987, %v991
    %v993 = vlaneseq
    %v994 = vshrl.u32 %v993, 7
    %v995 = vsub.s32 1, %v994
    %v996 = vrot.slane %v987, %v995
    %v997 = vlaneseq
    %v998 = vshrl.u32 %v997, 7
    %v999 = vsub.s32 2, %v998
    %v1000 = vrot.slane %v987, %v999
    %v1001 = vlaneseq
    %v1002 = vshrl.u32 %v1001, 7
    %v1003 = vsub.s32 3, %v1002
    %v1004 = vrot.slane %v987, %v1003
    %v1009 = vmul.f32 %v978, %v992
    %v1010 = vmul.f32 %v974, %v996
    %v1011 = vmul.f32 %v970, %v1000
    %v1012 = vmul.f32 %v982, %v1004
    %v1013 = vmul.f32 %v979, %v992
    %v1014 = vmul.f32 %v975, %v996
    %v1015 = vmul.f32 %v971, %v1000
    %v1016 = vmul.f32 %v983, %v1004
    %v1017 = vmul.f32 %v980, %v992
    %v1018 = vmul.f32 %v976, %v996
    %v1019 = vmul.f32 %v972, %v1000
    %v1020 = vmul.f32 %v984, %v1004
    %v1021 = vmul.f32 %v981, %v992
    %v1022 = vmul.f32 %v977, %v996
    %v1023 = vmul.f32 %v973, %v1000
    %v1024 = vmul.f32 %v985, %v1004
    %v1025 = vpack.c.bf16 %v1013, %v1009
    %v1026 = vpack.c.bf16 %v1014, %v1010
    %v1027 = vpack.c.bf16 %v1015, %v1011
    %v1028 = vpack.c.bf16 %v1016, %v1012
    %v1029 = vpack.c.bf16 %v1021, %v1017
    %v1030 = vpack.c.bf16 %v1022, %v1018
    %v1031 = vpack.c.bf16 %v1023, %v1019
    %v1032 = vpack.c.bf16 %v1024, %v1020
    %1033 = vrot.lane.b32.xlu0 %v432, 112
    %v1034 = vpop.permute.xlu0 %1033
    %1035 = vrot.lane.b32.xlu0 %v436, 112
    %v1036 = vpop.permute.xlu0 %1035
    %1037 = vrot.lane.b32.xlu0 %v440, 112
    %v1038 = vpop.permute.xlu0 %1037
    %1039 = vrot.lane.b32.xlu0 %v444, 112
    %v1040 = vpop.permute.xlu0 %1039
    %1041 = vrot.lane.b32.xlu0 %v433, 112
    %v1042 = vpop.permute.xlu0 %1041
    %1043 = vrot.lane.b32.xlu0 %v437, 112
    %v1044 = vpop.permute.xlu0 %1043
    %1045 = vrot.lane.b32.xlu0 %v441, 112
    %v1046 = vpop.permute.xlu0 %1045
    %1047 = vrot.lane.b32.xlu0 %v445, 112
    %v1048 = vpop.permute.xlu0 %1047
    %1049 = vrot.lane.b32.xlu0 %v434, 112
    %v1050 = vpop.permute.xlu0 %1049
    %1051 = vrot.lane.b32.xlu0 %v438, 112
    %v1052 = vpop.permute.xlu0 %1051
    %1053 = vrot.lane.b32.xlu0 %v442, 112
    %v1054 = vpop.permute.xlu0 %1053
    %1055 = vrot.lane.b32.xlu0 %v446, 112
    %v1056 = vpop.permute.xlu0 %1055
    %1057 = vrot.lane.b32.xlu0 %v435, 112
    %v1058 = vpop.permute.xlu0 %1057
    %1059 = vrot.lane.b32.xlu0 %v439, 112
    %v1060 = vpop.permute.xlu0 %1059
    %1061 = vrot.lane.b32.xlu0 %v443, 112
    %v1062 = vpop.permute.xlu0 %1061
    %1063 = vrot.lane.b32.xlu0 %v447, 112
    %v1064 = vpop.permute.xlu0 %1063
    %vm1065 = vcmp.lt.s32.totalorder %v481, 112
    %v1066 = vsel %vm1065, %v1050, %v1058
    %v1067 = vsel %vm1065, %v1052, %v1060
    %v1068 = vsel %vm1065, %v1054, %v1062
    %v1069 = vsel %vm1065, %v1056, %v1064
    %v1070 = vsel %vm1065, %v1042, %v1050
    %v1071 = vsel %vm1065, %v1044, %v1052
    %v1072 = vsel %vm1065, %v1046, %v1054
    %v1073 = vsel %vm1065, %v1048, %v1056
    %v1074 = vsel %vm1065, %v1034, %v1042
    %v1075 = vsel %vm1065, %v1036, %v1044
    %v1076 = vsel %vm1065, %v1038, %v1046
    %v1077 = vsel %vm1065, %v1040, %v1048
    %v1078 = vsel %vm1065, %v1058, %v1034
    %v1079 = vsel %vm1065, %v1060, %v1036
    %v1080 = vsel %vm1065, %v1062, %v1038
    %v1081 = vsel %vm1065, %v1064, %v1040
    %s1082 = scalar_lea.vmem %s6, 7
    %v1083 = vld [vmem:[%s1082] ss:$8 sm:$0xf]
    %v1085 = vlaneseq
    %v1086 = vshrl.u32 %v1085, 7
    %v1087 = vsub.s32 0, %v1086
    %v1088 = vrot.slane %v1083, %v1087
    %v1089 = vlaneseq
    %v1090 = vshrl.u32 %v1089, 7
    %v1091 = vsub.s32 1, %v1090
    %v1092 = vrot.slane %v1083, %v1091
    %v1093 = vlaneseq
    %v1094 = vshrl.u32 %v1093, 7
    %v1095 = vsub.s32 2, %v1094
    %v1096 = vrot.slane %v1083, %v1095
    %v1097 = vlaneseq
    %v1098 = vshrl.u32 %v1097, 7
    %v1099 = vsub.s32 3, %v1098
    %v1100 = vrot.slane %v1083, %v1099
    %v1105 = vmul.f32 %v1074, %v1088
    %v1106 = vmul.f32 %v1070, %v1092
    %v1107 = vmul.f32 %v1066, %v1096
    %v1108 = vmul.f32 %v1078, %v1100
    %v1109 = vmul.f32 %v1075, %v1088
    %v1110 = vmul.f32 %v1071, %v1092
    %v1111 = vmul.f32 %v1067, %v1096
    %v1112 = vmul.f32 %v1079, %v1100
    %v1113 = vmul.f32 %v1076, %v1088
    %v1114 = vmul.f32 %v1072, %v1092
    %v1115 = vmul.f32 %v1068, %v1096
    %v1116 = vmul.f32 %v1080, %v1100
    %v1117 = vmul.f32 %v1077, %v1088
    %v1118 = vmul.f32 %v1073, %v1092
    %v1119 = vmul.f32 %v1069, %v1096
    %v1120 = vmul.f32 %v1081, %v1100
    %v1121 = vpack.c.bf16 %v1109, %v1105
    %v1122 = vpack.c.bf16 %v1110, %v1106
    %v1123 = vpack.c.bf16 %v1111, %v1107
    %v1124 = vpack.c.bf16 %v1112, %v1108
    %v1125 = vpack.c.bf16 %v1117, %v1113
    %v1126 = vpack.c.bf16 %v1118, %v1114
    %v1127 = vpack.c.bf16 %v1119, %v1115
    %v1128 = vpack.c.bf16 %v1120, %v1116
    %1129 = vrot.lane.b32.xlu0 %v432, 111
    %v1130 = vpop.permute.xlu0 %1129
    %1131 = vrot.lane.b32.xlu0 %v436, 111
    %v1132 = vpop.permute.xlu0 %1131
    %1133 = vrot.lane.b32.xlu0 %v440, 111
    %v1134 = vpop.permute.xlu0 %1133
    %1135 = vrot.lane.b32.xlu0 %v444, 111
    %v1136 = vpop.permute.xlu0 %1135
    %1137 = vrot.lane.b32.xlu0 %v433, 111
    %v1138 = vpop.permute.xlu0 %1137
    %1139 = vrot.lane.b32.xlu0 %v437, 111
    %v1140 = vpop.permute.xlu0 %1139
    %1141 = vrot.lane.b32.xlu0 %v441, 111
    %v1142 = vpop.permute.xlu0 %1141
    %1143 = vrot.lane.b32.xlu0 %v445, 111
    %v1144 = vpop.permute.xlu0 %1143
    %1145 = vrot.lane.b32.xlu0 %v434, 111
    %v1146 = vpop.permute.xlu0 %1145
    %1147 = vrot.lane.b32.xlu0 %v438, 111
    %v1148 = vpop.permute.xlu0 %1147
    %1149 = vrot.lane.b32.xlu0 %v442, 111
    %v1150 = vpop.permute.xlu0 %1149
    %1151 = vrot.lane.b32.xlu0 %v446, 111
    %v1152 = vpop.permute.xlu0 %1151
    %1153 = vrot.lane.b32.xlu0 %v435, 111
    %v1154 = vpop.permute.xlu0 %1153
    %1155 = vrot.lane.b32.xlu0 %v439, 111
    %v1156 = vpop.permute.xlu0 %1155
    %1157 = vrot.lane.b32.xlu0 %v443, 111
    %v1158 = vpop.permute.xlu0 %1157
    %1159 = vrot.lane.b32.xlu0 %v447, 111
    %v1160 = vpop.permute.xlu0 %1159
    %vm1161 = vcmp.lt.s32.totalorder %v481, 111
    %v1162 = vsel %vm1161, %v1146, %v1154
    %v1163 = vsel %vm1161, %v1148, %v1156
    %v1164 = vsel %vm1161, %v1150, %v1158
    %v1165 = vsel %vm1161, %v1152, %v1160
    %v1166 = vsel %vm1161, %v1138, %v1146
    %v1167 = vsel %vm1161, %v1140, %v1148
    %v1168 = vsel %vm1161, %v1142, %v1150
    %v1169 = vsel %vm1161, %v1144, %v1152
    %v1170 = vsel %vm1161, %v1130, %v1138
    %v1171 = vsel %vm1161, %v1132, %v1140
    %v1172 = vsel %vm1161, %v1134, %v1142
    %v1173 = vsel %vm1161, %v1136, %v1144
    %v1174 = vsel %vm1161, %v1154, %v1130
    %v1175 = vsel %vm1161, %v1156, %v1132
    %v1176 = vsel %vm1161, %v1158, %v1134
    %v1177 = vsel %vm1161, %v1160, %v1136
    %s1178 = scalar_lea.vmem %s6, 32
    %v1179 = vld [vmem:[%s1178] ss:$8 sm:$0xf]
    %v1181 = vlaneseq
    %v1182 = vshrl.u32 %v1181, 7
    %v1183 = vsub.s32 0, %v1182
    %v1184 = vrot.slane %v1179, %v1183
    %v1185 = vlaneseq
    %v1186 = vshrl.u32 %v1185, 7
    %v1187 = vsub.s32 1, %v1186
    %v1188 = vrot.slane %v1179, %v1187
    %v1189 = vlaneseq
    %v1190 = vshrl.u32 %v1189, 7
    %v1191 = vsub.s32 2, %v1190
    %v1192 = vrot.slane %v1179, %v1191
    %v1193 = vlaneseq
    %v1194 = vshrl.u32 %v1193, 7
    %v1195 = vsub.s32 3, %v1194
    %v1196 = vrot.slane %v1179, %v1195
    %v1201 = vmul.f32 %v1170, %v1184
    %v1202 = vmul.f32 %v1166, %v1188
    %v1203 = vmul.f32 %v1162, %v1192
    %v1204 = vmul.f32 %v1174, %v1196
    %v1205 = vmul.f32 %v1171, %v1184
    %v1206 = vmul.f32 %v1167, %v1188
    %v1207 = vmul.f32 %v1163, %v1192
    %v1208 = vmul.f32 %v1175, %v1196
    %v1209 = vmul.f32 %v1172, %v1184
    %v1210 = vmul.f32 %v1168, %v1188
    %v1211 = vmul.f32 %v1164, %v1192
    %v1212 = vmul.f32 %v1176, %v1196
    %v1213 = vmul.f32 %v1173, %v1184
    %v1214 = vmul.f32 %v1169, %v1188
    %v1215 = vmul.f32 %v1165, %v1192
    %v1216 = vmul.f32 %v1177, %v1196
    %v1217 = vpack.c.bf16 %v1205, %v1201
    %v1218 = vpack.c.bf16 %v1206, %v1202
    %v1219 = vpack.c.bf16 %v1207, %v1203
    %v1220 = vpack.c.bf16 %v1208, %v1204
    %v1221 = vpack.c.bf16 %v1213, %v1209
    %v1222 = vpack.c.bf16 %v1214, %v1210
    %v1223 = vpack.c.bf16 %v1215, %v1211
    %v1224 = vpack.c.bf16 %v1216, %v1212
    %v1225 = vld [vmem:[%s5] sm:$0xff]
    %v1226 = vld [vmem:[%s5 + $0x8] sm:$0xf]
    %v1229 = vunpack.c.l.b16 %v1225
    %v1230 = vunpack.c.h.b16 %v1225
    %v1231 = vunpack.c.l.b16 %v1226
    %v1232 = vpack.c.b16 %v1229, %v1229
    %v1233 = vpack.c.b16 %v1230, %v1230
    %v1234 = vpack.c.b16 %v1231, %v1231
    %vm1237 = vcmask 261120
    %v1239 = vsel %vm1237, %v1234, 0
    %1241 = vmatprep.subr.bf16.mxu0 %v538
    %1242 = vmatpush1.bf16.msra.mxu0 %v537
    %1243 = vmatprep.subr.bf16.mxu0 %v542
    %1244 = vmatpush1.bf16.msra.mxu0 %v541
    %1245 = vmatprep.subr.bf16.mxu0 %v634
    %1246 = vmatpush1.bf16.msra.mxu0 %v633
    %1247 = vmatprep.subr.bf16.mxu0 %v638
    %1248 = vmatpush1.bf16.msra.mxu0 %v637
    %1249 = vmatprep.subr.bf16.mxu0 %v730
    %1250 = vmatpush1.bf16.msra.mxu0 %v729
    %1251 = vmatprep.subr.bf16.mxu0 %v734
    %1252 = vmatpush1.bf16.msra.mxu0 %v733
    %1253 = vmatprep.subr.bf16.mxu0 %v826
    %1254 = vmatpush1.bf16.msra.mxu0 %v825
    %1255 = vmatprep.subr.bf16.mxu0 %v830
    %1256 = vmatpush1.bf16.msra.mxu0 %v829
    %1257 = vmatprep.subr.bf16.mxu0 %v834
    %1258 = vmatpush1.bf16.msra.mxu0 %v833
    %1259 = vmatprep.subr.bf16.mxu0 %v838
    %1260 = vmatpush1.bf16.msra.mxu0 %v837
    %1261 = vmatprep.subr.bf16.mxu0 %v930
    %1262 = vmatpush1.bf16.msra.mxu0 %v929
    %1263 = vmatprep.subr.bf16.mxu0 %v934
    %1264 = vmatpush1.bf16.msra.mxu0 %v933
    %1265 = vmatprep.subr.bf16.mxu0 %v1026
    %1266 = vmatpush1.bf16.msra.mxu0 %v1025
    %1267 = vmatprep.subr.bf16.mxu0 %v1030
    %1268 = vmatpush1.bf16.msra.mxu0 %v1029
    %1269 = vmatprep.subr.bf16.mxu0 %v1122
    %1270 = vmatpush1.bf16.msra.mxu0 %v1121
    %1271 = vmatprep.subr.bf16.mxu0 %v1126
    %1272 = vmatpush1.bf16.msra.mxu0 %v1125
    %1273 = vmatprep.mubr.bf16.mxu0 %v1233
    %1274 = vmatmul.mubr.bf16.gmra.mrb[0].mxu0 %v1232
    %v1275 = vpop.f32.mrb[0].mxu0
    %v1276 = vadd.f32 0.0, %v1275
    %v1277 = vpop.f32.mrb[0].mxu0
    %v1278 = vadd.f32 0.0, %v1277
    %v1279 = vpop.f32.mrb[0].mxu0
    %v1280 = vpop.f32.mrb[0].mxu0
    %1281 = vdwg.mxu0
    %1282 = vmatprep.subr.bf16.mxu0 %v1218
    %1283 = vmatpush1.bf16.msra.mxu0 %v1217
    %1284 = vmatprep.subr.bf16.mxu0 %v1222
    %1285 = vmatpush1.bf16.msra.mxu0 %v1221
    %1286 = vmatprep.subr.bf16.mxu0 0
    %1287 = vmatpush1.bf16.msra.mxu0 0
    %1288 = vmatprep.subr.bf16.mxu0 0
    %1289 = vmatpush1.bf16.msra.mxu0 0
    %1290 = vmatprep.subr.bf16.mxu0 0
    %1291 = vmatpush1.bf16.msra.mxu0 0
    %1292 = vmatprep.subr.bf16.mxu0 0
    %1293 = vmatpush1.bf16.msra.mxu0 0
    %1294 = vmatprep.subr.bf16.mxu0 0
    %1295 = vmatpush1.bf16.msra.mxu0 0
    %1296 = vmatprep.subr.bf16.mxu0 0
    %1297 = vmatpush1.bf16.msra.mxu0 0
    %1298 = vmatprep.subr.bf16.mxu0 0
    %1299 = vmatpush1.bf16.msra.mxu0 0
    %1300 = vmatprep.subr.bf16.mxu0 0
    %1301 = vmatpush1.bf16.msra.mxu0 0
    %1302 = vmatprep.subr.bf16.mxu0 0
    %1303 = vmatpush1.bf16.msra.mxu0 0
    %1304 = vmatprep.subr.bf16.mxu0 0
    %1305 = vmatpush1.bf16.msra.mxu0 0
    %1306 = vmatprep.subr.bf16.mxu0 0
    %1307 = vmatpush1.bf16.msra.mxu0 0
    %1308 = vmatprep.subr.bf16.mxu0 0
    %1309 = vmatpush1.bf16.msra.mxu0 0
    %1310 = vmatprep.subr.bf16.mxu0 0
    %1311 = vmatpush1.bf16.msra.mxu0 0
    %1312 = vmatprep.subr.bf16.mxu0 0
    %1313 = vmatpush1.bf16.msra.mxu0 0
    %1314 = vmatprep.mubr.bf16.mxu0 0
    %1315 = vmatmul.mubr.bf16.gmra.mrb[0].mxu0 %v1239
    %v1316 = vpop.f32.mrb[0].mxu0
    %v1317 = vadd.f32 %v1276, %v1316
    %v1318 = vpop.f32.mrb[0].mxu0
    %v1319 = vadd.f32 %v1278, %v1318
    %v1320 = vpop.f32.mrb[0].mxu0
    %v1321 = vpop.f32.mrb[0].mxu0
    %1322 = vdwg.mxu0
    %1323 = vmatprep.subr.bf16.mxu0 %v540
    %1324 = vmatpush1.bf16.msra.mxu0 %v539
    %1325 = vmatprep.subr.bf16.mxu0 %v544
    %1326 = vmatpush1.bf16.msra.mxu0 %v543
    %1327 = vmatprep.subr.bf16.mxu0 %v636
    %1328 = vmatpush1.bf16.msra.mxu0 %v635
    %1329 = vmatprep.subr.bf16.mxu0 %v640
    %1330 = vmatpush1.bf16.msra.mxu0 %v639
    %1331 = vmatprep.subr.bf16.mxu0 %v732
    %1332 = vmatpush1.bf16.msra.mxu0 %v731
    %1333 = vmatprep.subr.bf16.mxu0 %v736
    %1334 = vmatpush1.bf16.msra.mxu0 %v735
    %1335 = vmatprep.subr.bf16.mxu0 %v828
    %1336 = vmatpush1.bf16.msra.mxu0 %v827
    %1337 = vmatprep.subr.bf16.mxu0 %v832
    %1338 = vmatpush1.bf16.msra.mxu0 %v831
    %1339 = vmatprep.subr.bf16.mxu0 %v836
    %1340 = vmatpush1.bf16.msra.mxu0 %v835
    %1341 = vmatprep.subr.bf16.mxu0 %v840
    %1342 = vmatpush1.bf16.msra.mxu0 %v839
    %1343 = vmatprep.subr.bf16.mxu0 %v932
    %1344 = vmatpush1.bf16.msra.mxu0 %v931
    %1345 = vmatprep.subr.bf16.mxu0 %v936
    %1346 = vmatpush1.bf16.msra.mxu0 %v935
    %1347 = vmatprep.subr.bf16.mxu0 %v1028
    %1348 = vmatpush1.bf16.msra.mxu0 %v1027
    %1349 = vmatprep.subr.bf16.mxu0 %v1032
    %1350 = vmatpush1.bf16.msra.mxu0 %v1031
    %1351 = vmatprep.subr.bf16.mxu0 %v1124
    %1352 = vmatpush1.bf16.msra.mxu0 %v1123
    %1353 = vmatprep.subr.bf16.mxu0 %v1128
    %1354 = vmatpush1.bf16.msra.mxu0 %v1127
    %1355 = vmatprep.mubr.bf16.mxu0 %v1233
    %1356 = vmatmul.mubr.bf16.gmra.mrb[0].mxu0 %v1232
    %v1357 = vpop.f32.mrb[0].mxu0
    %v1358 = vadd.f32 0.0, %v1357
    %v1359 = vpop.f32.mrb[0].mxu0
    %v1360 = vadd.f32 0.0, %v1359
    %v1361 = vpop.f32.mrb[0].mxu0
    %v1362 = vpop.f32.mrb[0].mxu0
    %1363 = vdwg.mxu0
    %1364 = vmatprep.subr.bf16.mxu0 %v1220
    %1365 = vmatpush1.bf16.msra.mxu0 %v1219
    %1366 = vmatprep.subr.bf16.mxu0 %v1224
    %1367 = vmatpush1.bf16.msra.mxu0 %v1223
    %1368 = vmatprep.subr.bf16.mxu0 0
    %1369 = vmatpush1.bf16.msra.mxu0 0
    %1370 = vmatprep.subr.bf16.mxu0 0
    %1371 = vmatpush1.bf16.msra.mxu0 0
    %1372 = vmatprep.subr.bf16.mxu0 0
    %1373 = vmatpush1.bf16.msra.mxu0 0
    %1374 = vmatprep.subr.bf16.mxu0 0
    %1375 = vmatpush1.bf16.msra.mxu0 0
    %1376 = vmatprep.subr.bf16.mxu0 0
    %1377 = vmatpush1.bf16.msra.mxu0 0
    %1378 = vmatprep.subr.bf16.mxu0 0
    %1379 = vmatpush1.bf16.msra.mxu0 0
    %1380 = vmatprep.subr.bf16.mxu0 0
    %1381 = vmatpush1.bf16.msra.mxu0 0
    %1382 = vmatprep.subr.bf16.mxu0 0
    %1383 = vmatpush1.bf16.msra.mxu0 0
    %1384 = vmatprep.subr.bf16.mxu0 0
    %1385 = vmatpush1.bf16.msra.mxu0 0
    %1386 = vmatprep.subr.bf16.mxu0 0
    %1387 = vmatpush1.bf16.msra.mxu0 0
    %1388 = vmatprep.subr.bf16.mxu0 0
    %1389 = vmatpush1.bf16.msra.mxu0 0
    %1390 = vmatprep.subr.bf16.mxu0 0
    %1391 = vmatpush1.bf16.msra.mxu0 0
    %1392 = vmatprep.subr.bf16.mxu0 0
    %1393 = vmatpush1.bf16.msra.mxu0 0
    %1394 = vmatprep.subr.bf16.mxu0 0
    %1395 = vmatpush1.bf16.msra.mxu0 0
    %1396 = vmatprep.mubr.bf16.mxu0 0
    %1397 = vmatmul.mubr.bf16.gmra.mrb[0].mxu0 %v1239
    %v1398 = vpop.f32.mrb[0].mxu0
    %v1399 = vadd.f32 %v1358, %v1398
    %v1400 = vpop.f32.mrb[0].mxu0
    %v1401 = vadd.f32 %v1360, %v1400
    %v1402 = vpop.f32.mrb[0].mxu0
    %v1403 = vpop.f32.mrb[0].mxu0
    %1404 = vdwg.mxu0
    %1405 = vst [vmem:[#allocation2] sm:$0xff] %v1317
    %1406 = vst [vmem:[#allocation2 + $0x8] sm:$0xff] %v1319
    %1407 = vst [vmem:[#allocation2 + $0x10] sm:$0xff] %v1399
    %1408 = vst [vmem:[#allocation2 + $0x18] sm:$0xff] %v1401
    // Predicated region
    $region30: #{tpu_custom_call.1} parent=1 // pred_check
      _
    $region31: #{tpu_custom_call.1} parent=1 // pred_check_branch
      %1410 = sbr.rel (0) target = $region33
    $region32: #{tpu_custom_call.1} parent=1 // pred_region
      %s1412 = ssub.s32 512, 512
      %1413 = vsyncadd [#allocation3], %s1412
      %s1415 = sshll.u32 [#allocation2], 4
      %s1416 = int_to_ptr.vmem [resolvable:$true] %s1415
      %1418 = dma.vmem_to_hbm [thread:$0]  %s1416, 512, %s7, [#allocation3]
    $region33: #{tpu_custom_call.1} parent=1 // pred_fallthru
      _
    // Predicated region
    $region34: #{tpu_custom_call.1} parent=1 // pred_check
      _
    $region35: #{tpu_custom_call.1} parent=1 // pred_check_branch
      %1420 = sbr.rel (0) target = $region37
    $region36: #{tpu_custom_call.1} parent=1 // pred_region
      %1421 = dma.done [#allocation3], 512
    $region37: #{tpu_custom_call.1} parent=1 // pred_fallthru
      _
    %1422 = vsyncpa [#allocation3], 1

</llo_original>
